<compile_context>
chip_gen: v7x
topology: tpu7x:2x2x1
jax: 0.10.0
libtpu: 0.0.40
codegen_flags: <defaults>
</compile_context>

<pallas_src>
import functools

import jax
import jax.numpy as jnp
from jax.experimental import pallas as pl
from jax.experimental.pallas import tpu as pltpu


# ---------------------------------------------------------------------------
# Kernel 1: xs = dinv * ([h | inc] @ [Wc' ; next_h @ Wf'])   (single bf16 matmul)
# ---------------------------------------------------------------------------
def features_kernel(x_ref, w_ref, dinv_ref, xs_ref):
    xw = jnp.dot(x_ref[...], w_ref[...], preferred_element_type=jnp.float32)
    xs_ref[...] = (dinv_ref[...] * xw).astype(xs_ref.dtype)


# ---------------------------------------------------------------------------
# Kernel 2: pre = ReLU-half(LayerNorm(dinv * (A @ xs + xs) + b_fused))
#           (rows, K) grid, f32 VMEM accumulator over K, xs VMEM-resident when
#           resident_xs=True, plus per-row-tile BatchNorm partial stats.
# ---------------------------------------------------------------------------
def aggregate_kernel(a_ref, xs_k_ref, xs_i_ref, dinv_ref, b_ref, lng_ref,
                     lnb_ref, pre_ref, psum_ref, psq_ref, acc_ref,
                     *, tk, resident_xs):
    k = pl.program_id(1)

    @pl.when(k == 0)
    def _():
        acc_ref[...] = jnp.zeros_like(acc_ref)

    if resident_xs:
        start = pl.multiple_of(k * tk, tk)
        xs_k = xs_k_ref[pl.ds(start, tk), :]       # slice of the resident xs block
    else:
        xs_k = xs_k_ref[...]                       # streamed (tk, f_out) block

    # bf16 x bf16 -> f32 accumulation on the MXU
    acc_ref[...] += jnp.dot(a_ref[...], xs_k, preferred_element_type=jnp.float32)

    @pl.when(k == pl.num_programs(1) - 1)
    def _():
        # symmetric normalization + self-loop + folded GraphConv bias (all f32)
        agg = dinv_ref[...] * (acc_ref[...] + xs_i_ref[...].astype(jnp.float32))
        agg = agg + b_ref[...]
        # LayerNorm over the feature dim (eps=1e-5, biased var)
        mean = jnp.mean(agg, axis=-1, keepdims=True)
        var = jnp.mean((agg - mean) ** 2, axis=-1, keepdims=True)
        y = (agg - mean) * jax.lax.rsqrt(var + 1e-5)
        y = y * lng_ref[...] + lnb_ref[...]
        # cat([y[:, :n], relu(y[:, n:])], dim=1) via a lane mask
        n_half = y.shape[-1] // 2
        col = jax.lax.broadcasted_iota(jnp.int32, y.shape, 1)
        y = jnp.where(col < n_half, y, jnp.maximum(y, 0.0))
        pre_ref[...] = y.astype(pre_ref.dtype)     # bf16 storage, f32 math
        # per-row-tile BatchNorm partials, replicated over 8 sublanes so the
        # stats output block keeps an (8, F) tile-aligned shape
        s = jnp.sum(y, axis=0, keepdims=True)
        sq = jnp.sum(y * y, axis=0, keepdims=True)
        psum_ref[...] = jnp.broadcast_to(s, psum_ref.shape)
        psq_ref[...] = jnp.broadcast_to(sq, psq_ref.shape)


# ---------------------------------------------------------------------------
# Kernel 3: out = pre * scale + shift  (BN stats pre-folded into scale/shift)
# ---------------------------------------------------------------------------
def apply_bn_kernel(pre_ref, scale_ref, shift_ref, out_ref):
    out_ref[...] = (pre_ref[...].astype(jnp.float32) * scale_ref[...]
                    + shift_ref[...])


# ---------------------------------------------------------------------------
# Wrapper
# ---------------------------------------------------------------------------
def lgcore_forward(adj, curr_h, curr_inc, next_h, params, *, tm=512, tk=512, tr=512):
    """LGCore 'top_down' forward.
    adj: dense 0/1 adjacency [N, N] WITHOUT self-loops (bf16 preferred; 0/1 is exact).
         Self-loops and DGL GraphConv 'both' normalization are applied analytically.
    curr_h: [N, F_in], curr_inc: [N, M], next_h: [M, F_in]."""
    N, M = curr_inc.shape
    f_in = curr_h.shape[1]
    f_out = params["w_conv"].shape[1]

    tm = min(tm, N)
    tk = min(tk, N)
    tr = min(tr, N)
    assert N % tm == 0 and N % tk == 0 and N % tr == 0, \
        "N must be divisible by the tile sizes"
    # TODO(synk): ragged N needs pl.cdiv grids plus masking of the partial tiles.
    n_row, n_k, n_r = N // tm, N // tk, N // tr

    # --- bf16 adjacency end-to-end; degrees from the bf16 copy (0/1 -> exact) ----
    a_bf16 = adj if adj.dtype == jnp.bfloat16 else adj.astype(jnp.bfloat16)
    deg = jnp.sum(a_bf16, axis=1, dtype=jnp.float32) + 1.0        # add_self_loop
    dinv = jax.lax.rsqrt(deg).reshape(N, 1)

    # --- tiny XLA glue: fold conv_w / topDown_w, biases, and next_h @ Wf' ---------
    conv_w = params["conv_w"].reshape(1, -1).astype(jnp.float32)
    td_w = params["topDown_w"].reshape(1, -1).astype(jnp.float32)
    wc = params["w_conv"].astype(jnp.float32) * conv_w            # fold conv_w
    wf = params["w_fus"].astype(jnp.float32) * td_w               # fold topDown_w
    b_fused = (params["b_conv"].astype(jnp.float32) * conv_w
               + params["b_fus"].astype(jnp.float32) * td_w)      # (1, f_out)

    wf_nh = next_h.astype(jnp.float32) @ wf                       # (M, f_out), tiny
    w_cat = jnp.concatenate([wc, wf_nh], axis=0).astype(jnp.bfloat16)
    x_cat = jnp.concatenate(
        [curr_h.astype(jnp.bfloat16), curr_inc.astype(jnp.bfloat16)], axis=1)
    k_cat = f_in + M

    row = lambda v: v.reshape(1, -1).astype(jnp.float32)

    # --- kernel 1: single fused bf16 matmul + dinv row scaling -------------------
    xs = pl.pallas_call(
        features_kernel,
        out_shape=jax.ShapeDtypeStruct((N, f_out), jnp.bfloat16),
        grid=(n_r,),
        in_specs=[
            pl.BlockSpec((tr, k_cat), lambda i: (i, 0)),
            pl.BlockSpec((k_cat, f_out), lambda i: (0, 0)),
            pl.BlockSpec((tr, 1), lambda i: (i, 0)),
        ],
        out_specs=pl.BlockSpec((tr, f_out), lambda i: (i, 0)),
        compiler_params=pltpu.CompilerParams(dimension_semantics=("parallel",)),
    )(x_cat, w_cat, dinv)

    # --- kernel 2: A @ xs with VMEM-resident xs when it fits the budget ----------
    xs_bytes = N * f_out * 2
    resident_xs = xs_bytes <= 12 * 1024 * 1024     # stays comfortable on v7x (64 MiB)
    if resident_xs:
        xs_k_spec = pl.BlockSpec((N, f_out), lambda i, k: (0, 0))
        xs_k_buf = 2 * xs_bytes                    # conservative: assume 2 buffers
    else:
        xs_k_spec = pl.BlockSpec((tk, f_out), lambda i, k: (k, 0))
        xs_k_buf = 2 * tk * f_out * 2

    vmem_needed = (2 * tm * tk * 2                 # A tiles (double-buffered, bf16)
                   + xs_k_buf                      # xs (resident or streamed)
                   + 2 * tm * f_out * 2            # xs self-loop rows
                   + tm * f_out * 4                # f32 accumulator scratch
                   + 2 * tm * f_out * 2            # bf16 pre output
                   + 4 * 2 * 8 * f_out * 4         # BN partial outputs
                   + 4 * (tm + 3 * f_out))         # dinv / bias / LN params
    vmem_limit = int(min(64 * 2**20, max(32 * 2**20, int(vmem_needed * 1.5))))

    flops = 2 * N * N * f_out + 16 * N * f_out
    bytes_accessed = (N * N * 2
                      + (1 if resident_xs else n_row) * N * f_out * 2
                      + 2 * N * f_out * 2
                      + 2 * n_row * 8 * f_out * 4 + N * 4)

    pre_bn, psum, psq = pl.pallas_call(
        functools.partial(aggregate_kernel, tk=tk, resident_xs=resident_xs),
        out_shape=(
            jax.ShapeDtypeStruct((N, f_out), jnp.bfloat16),
            jax.ShapeDtypeStruct((n_row * 8, f_out), jnp.float32),
            jax.ShapeDtypeStruct((n_row * 8, f_out), jnp.float32),
        ),
        grid=(n_row, n_k),
        in_specs=[
            pl.BlockSpec((tm, tk), lambda i, k: (i, k)),       # A tile
            xs_k_spec,                                         # xs (resident/streamed)
            pl.BlockSpec((tm, f_out), lambda i, k: (i, 0)),    # xs rows for self-loop
            pl.BlockSpec((tm, 1), lambda i, k: (i, 0)),        # dinv rows
            pl.BlockSpec((1, f_out), lambda i, k: (0, 0)),     # folded bias
            pl.BlockSpec((1, f_out), lambda i, k: (0, 0)),     # LN gamma
            pl.BlockSpec((1, f_out), lambda i, k: (0, 0)),     # LN beta
        ],
        out_specs=(
            pl.BlockSpec((tm, f_out), lambda i, k: (i, 0)),
            pl.BlockSpec((8, f_out), lambda i, k: (i, 0)),
            pl.BlockSpec((8, f_out), lambda i, k: (i, 0)),
        ),
        scratch_shapes=[pltpu.VMEM((tm, f_out), jnp.float32)],
        compiler_params=pltpu.CompilerParams(
            dimension_semantics=("parallel", "arbitrary"),
            vmem_limit_bytes=vmem_limit),
        cost_estimate=pl.CostEstimate(flops=flops, transcendentals=2 * N,
                                      bytes_accessed=bytes_accessed),
    )(a_bf16, xs, xs, dinv, b_fused,
      row(params["ln_gamma"]), row(params["ln_beta"]))

    # --- BN statistics reduced ONCE (tiny XLA op) -> scale/shift for kernel 3 ----
    total = jnp.sum(psum, axis=0, keepdims=True) * (1.0 / 8.0)   # undo sublane rep.
    totsq = jnp.sum(psq, axis=0, keepdims=True) * (1.0 / 8.0)
    mean = total * (1.0 / N)
    var = totsq * (1.0 / N) - mean * mean                        # biased batch var
    scale = row(params["bn_gamma"]) * jax.lax.rsqrt(var + 1e-5)
    shift = row(params["bn_beta"]) - mean * scale

    # --- kernel 3: pure elementwise BatchNorm apply -------------------------------
    out = pl.pallas_call(
        apply_bn_kernel,
        out_shape=jax.ShapeDtypeStruct((N, f_out), jnp.float32),
        grid=(n_r,),
        in_specs=[
            pl.BlockSpec((tr, f_out), lambda i: (i, 0)),
            pl.BlockSpec((1, f_out), lambda i: (0, 0)),
            pl.BlockSpec((1, f_out), lambda i: (0, 0)),
        ],
        out_specs=pl.BlockSpec((tr, f_out), lambda i: (i, 0)),
        compiler_params=pltpu.CompilerParams(dimension_semantics=("parallel",)),
    )(pre_bn, scale, shift)

    return out


# ---------------------------------------------------------------------------
# Pure-JAX f32 reference (mirrors the PyTorch top_down branch) for validation
# ---------------------------------------------------------------------------
def reference_forward(adj, curr_h, curr_inc, next_h, p):
    adj = adj.astype(jnp.float32)
    N = adj.shape[0]
    a_hat = adj + jnp.eye(N, dtype=jnp.float32)
    deg = jnp.sum(a_hat, axis=1)
    dinv = 1.0 / jnp.sqrt(deg)
    a_norm = dinv[:, None] * a_hat * dinv[None, :]
    conv = a_norm @ (curr_h @ p["w_conv"]) + p["b_conv"][None, :]
    z = curr_inc @ next_h
    top = a_norm @ (z @ p["w_fus"]) + p["b_fus"][None, :]
    r = conv * p["conv_w"][None, :] + top * p["topDown_w"][None, :]
    mean = r.mean(-1, keepdims=True)
    var = ((r - mean) ** 2).mean(-1, keepdims=True)
    r = (r - mean) / jnp.sqrt(var + 1e-5) * p["ln_gamma"][None, :] + p["ln_beta"][None, :]
    n = r.shape[1] // 2
    r = jnp.concatenate([r[:, :n], jnp.maximum(r[:, n:], 0.0)], axis=1)
    bm = r.mean(0, keepdims=True)
    bv = ((r - bm) ** 2).mean(0, keepdims=True)
    return (r - bm) / jnp.sqrt(bv + 1e-5) * p["bn_gamma"][None, :] + p["bn_beta"][None, :]


if __name__ == "__main__":
    key = jax.random.PRNGKey(0)
    ks = jax.random.split(key, 12)

    N, M = 256, 64           # current-level nodes, next-level (line-graph) nodes
    F_IN, F_OUT = 32, 128    # in_feats, out_feats (lane-dense feature dim)

    # Deterministic synthetic graph: symmetric 0/1 adjacency, no self-loops,
    # materialized directly in bf16 (0/1 is exact) and consumed bf16 end-to-end.
    rand_adj = jax.random.uniform(ks[0], (N, N))
    adj = ((rand_adj + rand_adj.T) > 1.2).astype(jnp.float32)
    adj = adj * (1.0 - jnp.eye(N, dtype=jnp.float32))
    adj = adj.astype(jnp.bfloat16)

    curr_h = jax.random.normal(ks[1], (N, F_IN), dtype=jnp.float32)
    next_h = jax.random.normal(ks[2], (M, F_IN), dtype=jnp.float32)
    curr_inc = (jax.random.uniform(ks[3], (N, M)) > 0.6).astype(jnp.float32)

    params = {
        "w_conv":    jax.random.normal(ks[4], (F_IN, F_OUT), jnp.float32) * 0.1,
        "b_conv":    jax.random.normal(ks[8], (F_OUT,), jnp.float32) * 0.1,
        "w_fus":     jax.random.normal(ks[5], (F_IN, F_OUT), jnp.float32) * 0.1,
        "b_fus":     jax.random.normal(ks[9], (F_OUT,), jnp.float32) * 0.1,
        "conv_w":    jax.random.uniform(ks[6], (F_OUT,), jnp.float32),
        "topDown_w": jax.random.uniform(ks[7], (F_OUT,), jnp.float32),
        "ln_gamma":  jnp.ones((F_OUT,), jnp.float32),
        "ln_beta":   jnp.zeros((F_OUT,), jnp.float32),
        "bn_gamma":  jnp.ones((F_OUT,), jnp.float32),
        "bn_beta":   jnp.zeros((F_OUT,), jnp.float32),
    }
    # TODO(synk): gat_conv / lin from LGCore.__init__ are only referenced inside a
    # dead string literal in forward(), so they are intentionally not implemented.

    out = jax.jit(lgcore_forward)(adj, curr_h, curr_inc, next_h, params)
    jax.block_until_ready(out)
    assert out.shape == (N, F_OUT) and out.dtype == jnp.float32
    assert bool(jnp.all(jnp.isfinite(out)))

    ref = reference_forward(adj, curr_h, curr_inc, next_h, params)
    max_err = float(jnp.max(jnp.abs(out - ref)))
    assert max_err < 0.15, f"kernel/reference mismatch: max |err| = {max_err}"
    print("KERNEL_OK")
</pallas_src>

<mosaic_0001>
module attributes {stable_mosaic.version = 11 : i64} {
  func.func @features_kernel(%arg0: i32, %arg1: memref<256x96xbf16, #tpu.memory_space<vmem>>, %arg2: memref<96x128xbf16, #tpu.memory_space<vmem>>, %arg3: memref<256x1xf32, #tpu.memory_space<vmem>>, %arg4: memref<256x128xbf16, #tpu.memory_space<vmem>>) attributes {dimension_semantics = [#tpu.dimension_semantics<parallel>], iteration_bounds = array<i64: 1>, scalar_prefetch = 0 : i64, scratch_operands = 0 : i64, tpu.core_type = #tpu.core_type<tc>, window_params = [{transform_indices = @transform_0, window_bounds = array<i64: 256, 96>}, {pipeline_mode = #tpu.pipeline_mode<synchronous>, transform_indices = @transform_1, window_bounds = array<i64: 96, 128>}, {transform_indices = @transform_2, window_bounds = array<i64: 256, 1>}, {transform_indices = @transform_3, window_bounds = array<i64: 256, 128>}]} {
    %c0 = arith.constant 0 : index
    %c0_0 = arith.constant 0 : index
    %0 = vector.load %arg1[%c0, %c0_0] : memref<256x96xbf16, #tpu.memory_space<vmem>>, vector<256x96xbf16>
    %c0_1 = arith.constant 0 : index
    %c0_2 = arith.constant 0 : index
    %1 = vector.load %arg2[%c0_1, %c0_2] : memref<96x128xbf16, #tpu.memory_space<vmem>>, vector<96x128xbf16>
    %cst = arith.constant dense<0.000000e+00> : vector<256x128xf32>
    %2 = tpu.matmul %0, %1, %cst {dimension_numbers = #tpu.dot_dimension_numbers<[1], [0], [0], [1], [0, 0, 1, 1], [], []>} : vector<256x96xbf16>, vector<96x128xbf16>, vector<256x128xf32> -> vector<256x128xf32>
    %c0_3 = arith.constant 0 : index
    %c0_4 = arith.constant 0 : index
    %3 = vector.load %arg3[%c0_3, %c0_4] : memref<256x1xf32, #tpu.memory_space<vmem>>, vector<256x1xf32>
    %4 = vector.broadcast %3 : vector<256x1xf32> to vector<256x128xf32>
    %5 = arith.mulf %4, %2 : vector<256x128xf32>
    %6 = arith.truncf %5 : vector<256x128xf32> to vector<256x128xbf16>
    %c0_5 = arith.constant 0 : index
    %c0_6 = arith.constant 0 : index
    %7 = vector.load %arg4[%c0_5, %c0_6] : memref<256x128xbf16, #tpu.memory_space<vmem>>, vector<256x128xbf16>
    tpu.vector_store %arg4[%c0_5, %c0_6], %6 {strides = array<i32>} : memref<256x128xbf16, #tpu.memory_space<vmem>>, vector<256x128xbf16>,
    return
  }
  func.func @transform_0(%arg0: i32) -> (i32, i32) {
    %c0_i32 = arith.constant 0 : i32
    %c0_i32_0 = arith.constant 0 : i32
    return %arg0, %c0_i32 : i32, i32
  }
  func.func @transform_1(%arg0: i32) -> (i32, i32) {
    %c0_i32 = arith.constant 0 : i32
    %c0_i32_0 = arith.constant 0 : i32
    %c0_i32_1 = arith.constant 0 : i32
    return %c0_i32, %c0_i32_0 : i32, i32
  }
  func.func @transform_2(%arg0: i32) -> (i32, i32) {
    %c0_i32 = arith.constant 0 : i32
    %c0_i32_0 = arith.constant 0 : i32
    return %arg0, %c0_i32 : i32, i32
  }
  func.func @transform_3(%arg0: i32) -> (i32, i32) {
    %c0_i32 = arith.constant 0 : i32
    %c0_i32_0 = arith.constant 0 : i32
    return %arg0, %c0_i32 : i32, i32
  }
}

module attributes {stable_mosaic.version = 11 : i64} {
  func.func @aggregate_kernel(%arg0: i32, %arg1: i32, %arg2: memref<256x256xbf16, #tpu.memory_space<vmem>>, %arg3: memref<256x128xbf16, #tpu.memory_space<vmem>>, %arg4: memref<256x128xbf16, #tpu.memory_space<vmem>>, %arg5: memref<256x1xf32, #tpu.memory_space<vmem>>, %arg6: memref<1x128xf32, #tpu.memory_space<vmem>>, %arg7: memref<1x128xf32, #tpu.memory_space<vmem>>, %arg8: memref<1x128xf32, #tpu.memory_space<vmem>>, %arg9: memref<256x128xbf16, #tpu.memory_space<vmem>>, %arg10: memref<8x128xf32, #tpu.memory_space<vmem>>, %arg11: memref<8x128xf32, #tpu.memory_space<vmem>>, %arg12: memref<256x128xf32, #tpu.memory_space<vmem>>) attributes {dimension_semantics = [#tpu.dimension_semantics<parallel>, #tpu.dimension_semantics<arbitrary>], iteration_bounds = array<i64: 1, 1>, scalar_prefetch = 0 : i64, scratch_operands = 1 : i64, tpu.core_type = #tpu.core_type<tc>, window_params = [{transform_indices = @transform_0, window_bounds = array<i64: 256, 256>}, {pipeline_mode = #tpu.pipeline_mode<synchronous>, transform_indices = @transform_1, window_bounds = array<i64: 256, 128>}, {transform_indices = @transform_2, window_bounds = array<i64: 256, 128>}, {transform_indices = @transform_3, window_bounds = array<i64: 256, 1>}, {pipeline_mode = #tpu.pipeline_mode<synchronous>, transform_indices = @transform_4, window_bounds = array<i64: 1, 128>}, {pipeline_mode = #tpu.pipeline_mode<synchronous>, transform_indices = @transform_5, window_bounds = array<i64: 1, 128>}, {pipeline_mode = #tpu.pipeline_mode<synchronous>, transform_indices = @transform_6, window_bounds = array<i64: 1, 128>}, {transform_indices = @transform_7, window_bounds = array<i64: 256, 128>}, {transform_indices = @transform_8, window_bounds = array<i64: 8, 128>}, {transform_indices = @transform_9, window_bounds = array<i64: 8, 128>}]} {
    %c0_i32 = arith.constant 0 : i32
    %0 = arith.cmpi eq, %arg1, %c0_i32 : i32
    %1 = arith.extui %0 : i1 to i32
    %c0_i32_0 = arith.constant 0 : i32
    %2 = arith.cmpi ne, %1, %c0_i32_0 : i32
    scf.if %2 {
      %cst_9 = arith.constant 0.000000e+00 : f32
      %15 = vector.broadcast %cst_9 : f32 to vector<256x128xf32>
      %c0_10 = arith.constant 0 : index
      %c0_11 = arith.constant 0 : index
      %16 = vector.load %arg12[%c0_10, %c0_11] : memref<256x128xf32, #tpu.memory_space<vmem>>, vector<256x128xf32>
      tpu.vector_store %arg12[%c0_10, %c0_11], %15 {strides = array<i32>} : memref<256x128xf32, #tpu.memory_space<vmem>>, vector<256x128xf32>,
    } else {
    }
    %c256_i32 = arith.constant 256 : i32
    %3 = arith.muli %arg1, %c256_i32 : i32
    %4 = tpu.assume_multiple %3, 256 : i32
    %5 = arith.index_cast %4 : i32 to index
    %c0 = arith.constant 0 : index
    %6 = vector.load %arg3[%5, %c0] : memref<256x128xbf16, #tpu.memory_space<vmem>>, vector<256x128xbf16>
    %c0_1 = arith.constant 0 : index
    %c0_2 = arith.constant 0 : index
    %7 = vector.load %arg12[%c0_1, %c0_2] : memref<256x128xf32, #tpu.memory_space<vmem>>, vector<256x128xf32>
    %c0_3 = arith.constant 0 : index
    %c0_4 = arith.constant 0 : index
    %8 = vector.load %arg2[%c0_3, %c0_4] : memref<256x256xbf16, #tpu.memory_space<vmem>>, vector<256x256xbf16>
    %cst = arith.constant dense<0.000000e+00> : vector<256x128xf32>
    %9 = tpu.matmul %8, %6, %cst {dimension_numbers = #tpu.dot_dimension_numbers<[1], [0], [0], [1], [0, 0, 1, 1], [], []>} : vector<256x256xbf16>, vector<256x128xbf16>, vector<256x128xf32> -> vector<256x128xf32>
    %10 = arith.addf %7, %9 : vector<256x128xf32>
    %c0_5 = arith.constant 0 : index
    %c0_6 = arith.constant 0 : index
    %11 = vector.load %arg12[%c0_5, %c0_6] : memref<256x128xf32, #tpu.memory_space<vmem>>, vector<256x128xf32>
    tpu.vector_store %arg12[%c0_5, %c0_6], %10 {strides = array<i32>} : memref<256x128xf32, #tpu.memory_space<vmem>>, vector<256x128xf32>,
    %c0_i32_7 = arith.constant 0 : i32
    %12 = arith.cmpi eq, %arg1, %c0_i32_7 : i32
    %13 = arith.extui %12 : i1 to i32
    %c0_i32_8 = arith.constant 0 : i32
    %14 = arith.cmpi ne, %13, %c0_i32_8 : i32
    scf.if %14 {
      %c0_9 = arith.constant 0 : index
      %c0_10 = arith.constant 0 : index
      %15 = vector.load %arg5[%c0_9, %c0_10] : memref<256x1xf32, #tpu.memory_space<vmem>>, vector<256x1xf32>
      %c0_11 = arith.constant 0 : index
      %c0_12 = arith.constant 0 : index
      %16 = vector.load %arg12[%c0_11, %c0_12] : memref<256x128xf32, #tpu.memory_space<vmem>>, vector<256x128xf32>
      %c0_13 = arith.constant 0 : index
      %c0_14 = arith.constant 0 : index
      %17 = vector.load %arg4[%c0_13, %c0_14] : memref<256x128xbf16, #tpu.memory_space<vmem>>, vector<256x128xbf16>
      %18 = arith.extf %17 : vector<256x128xbf16> to vector<256x128xf32>
      %19 = arith.addf %16, %18 : vector<256x128xf32>
      %20 = vector.broadcast %15 : vector<256x1xf32> to vector<256x128xf32>
      %21 = arith.mulf %20, %19 : vector<256x128xf32>
      %c0_15 = arith.constant 0 : index
      %c0_16 = arith.constant 0 : index
      %22 = vector.load %arg6[%c0_15, %c0_16] : memref<1x128xf32, #tpu.memory_space<vmem>>, vector<1x128xf32>
      %23 = vector.broadcast %22 : vector<1x128xf32> to vector<256x128xf32>
      %24 = arith.addf %21, %23 : vector<256x128xf32>
      %cst_17 = arith.constant dense<0.000000e+00> : vector<256xf32>
      %25 = vector.multi_reduction <add>, %24, %cst_17 [1] : vector<256x128xf32> to vector<256xf32>
      %26 = vector.shape_cast %25 : vector<256xf32> to vector<256x1xf32>
      %cst_18 = arith.constant 1.280000e+02 : f32
      %27 = vector.broadcast %cst_18 : f32 to vector<256x1xf32>
      %28 = arith.divf %26, %27 : vector<256x1xf32>
      %29 = vector.broadcast %28 : vector<256x1xf32> to vector<256x128xf32>
      %30 = arith.subf %24, %29 : vector<256x128xf32>
      %31 = arith.mulf %30, %30 : vector<256x128xf32>
      %cst_19 = arith.constant dense<0.000000e+00> : vector<256xf32>
      %32 = vector.multi_reduction <add>, %31, %cst_19 [1] : vector<256x128xf32> to vector<256xf32>
      %33 = vector.shape_cast %32 : vector<256xf32> to vector<256x1xf32>
      %cst_20 = arith.constant 1.280000e+02 : f32
      %34 = vector.broadcast %cst_20 : f32 to vector<256x1xf32>
      %35 = arith.divf %33, %34 : vector<256x1xf32>
      %36 = vector.broadcast %28 : vector<256x1xf32> to vector<256x128xf32>
      %37 = arith.subf %24, %36 : vector<256x128xf32>
      %cst_21 = arith.constant 9.99999974E-6 : f32
      %38 = vector.broadcast %cst_21 : f32 to vector<256x1xf32>
      %39 = arith.addf %35, %38 : vector<256x1xf32>
      %40 = math.rsqrt %39 : vector<256x1xf32>
      %41 = vector.broadcast %40 : vector<256x1xf32> to vector<256x128xf32>
      %42 = arith.mulf %37, %41 : vector<256x128xf32>
      %c0_22 = arith.constant 0 : index
      %c0_23 = arith.constant 0 : index
      %43 = vector.load %arg7[%c0_22, %c0_23] : memref<1x128xf32, #tpu.memory_space<vmem>>, vector<1x128xf32>
      %44 = vector.broadcast %43 : vector<1x128xf32> to vector<256x128xf32>
      %45 = arith.mulf %42, %44 : vector<256x128xf32>
      %c0_24 = arith.constant 0 : index
      %c0_25 = arith.constant 0 : index
      %46 = vector.load %arg8[%c0_24, %c0_25] : memref<1x128xf32, #tpu.memory_space<vmem>>, vector<1x128xf32>
      %47 = vector.broadcast %46 : vector<1x128xf32> to vector<256x128xf32>
      %48 = arith.addf %45, %47 : vector<256x128xf32>
      %49 = tpu.iota {dimensions = array<i32: 1>} : vector<256x128xi32>
      %c64_i32 = arith.constant 64 : i32
      %50 = vector.broadcast %c64_i32 : i32 to vector<256x128xi32>
      %51 = arith.cmpi slt, %49, %50 : vector<256x128xi32>
      %cst_26 = arith.constant 0.000000e+00 : f32
      %52 = vector.broadcast %cst_26 : f32 to vector<256x128xf32>
      %53 = arith.maximumf %48, %52 : vector<256x128xf32>
      %54 = arith.select %51, %48, %53 : vector<256x128xi1>, vector<256x128xf32>
      %55 = arith.truncf %54 : vector<256x128xf32> to vector<256x128xbf16>
      %c0_27 = arith.constant 0 : index
      %c0_28 = arith.constant 0 : index
      %56 = vector.load %arg9[%c0_27, %c0_28] : memref<256x128xbf16, #tpu.memory_space<vmem>>, vector<256x128xbf16>
      tpu.vector_store %arg9[%c0_27, %c0_28], %55 {strides = array<i32>} : memref<256x128xbf16, #tpu.memory_space<vmem>>, vector<256x128xbf16>,
      %cst_29 = arith.constant dense<0.000000e+00> : vector<128xf32>
      %57 = vector.multi_reduction <add>, %54, %cst_29 [0] : vector<256x128xf32> to vector<128xf32>
      %58 = vector.shape_cast %57 : vector<128xf32> to vector<1x128xf32>
      %59 = arith.mulf %54, %54 : vector<256x128xf32>
      %cst_30 = arith.constant dense<0.000000e+00> : vector<128xf32>
      %60 = vector.multi_reduction <add>, %59, %cst_30 [0] : vector<256x128xf32> to vector<128xf32>
      %61 = vector.shape_cast %60 : vector<128xf32> to vector<1x128xf32>
      %62 = vector.shape_cast %58 : vector<1x128xf32> to vector<1x128xf32>
      %63 = vector.broadcast %62 : vector<1x128xf32> to vector<8x128xf32>
      %c0_31 = arith.constant 0 : index
      %c0_32 = arith.constant 0 : index
      %64 = vector.load %arg10[%c0_31, %c0_32] : memref<8x128xf32, #tpu.memory_space<vmem>>, vector<8x128xf32>
      tpu.vector_store %arg10[%c0_31, %c0_32], %63 {strides = array<i32>} : memref<8x128xf32, #tpu.memory_space<vmem>>, vector<8x128xf32>,
      %65 = vector.shape_cast %61 : vector<1x128xf32> to vector<1x128xf32>
      %66 = vector.broadcast %65 : vector<1x128xf32> to vector<8x128xf32>
      %c0_33 = arith.constant 0 : index
      %c0_34 = arith.constant 0 : index
      %67 = vector.load %arg11[%c0_33, %c0_34] : memref<8x128xf32, #tpu.memory_space<vmem>>, vector<8x128xf32>
      tpu.vector_store %arg11[%c0_33, %c0_34], %66 {strides = array<i32>} : memref<8x128xf32, #tpu.memory_space<vmem>>, vector<8x128xf32>,
    } else {
    }
    return
  }
  func.func @transform_0(%arg0: i32, %arg1: i32) -> (i32, i32) {
    %c0_i32 = arith.constant 0 : i32
    return %arg0, %arg1 : i32, i32
  }
  func.func @transform_1(%arg0: i32, %arg1: i32) -> (i32, i32) {
    %c0_i32 = arith.constant 0 : i32
    %c0_i32_0 = arith.constant 0 : i32
    %c0_i32_1 = arith.constant 0 : i32
    return %c0_i32, %c0_i32_0 : i32, i32
  }
  func.func @transform_2(%arg0: i32, %arg1: i32) -> (i32, i32) {
    %c0_i32 = arith.constant 0 : i32
    %c0_i32_0 = arith.constant 0 : i32
    return %arg0, %c0_i32 : i32, i32
  }
  func.func @transform_3(%arg0: i32, %arg1: i32) -> (i32, i32) {
    %c0_i32 = arith.constant 0 : i32
    %c0_i32_0 = arith.constant 0 : i32
    return %arg0, %c0_i32 : i32, i32
  }
  func.func @transform_4(%arg0: i32, %arg1: i32) -> (i32, i32) {
    %c0_i32 = arith.constant 0 : i32
    %c0_i32_0 = arith.constant 0 : i32
    %c0_i32_1 = arith.constant 0 : i32
    return %c0_i32, %c0_i32_0 : i32, i32
  }
  func.func @transform_5(%arg0: i32, %arg1: i32) -> (i32, i32) {
    %c0_i32 = arith.constant 0 : i32
    %c0_i32_0 = arith.constant 0 : i32
    %c0_i32_1 = arith.constant 0 : i32
    return %c0_i32, %c0_i32_0 : i32, i32
  }
  func.func @transform_6(%arg0: i32, %arg1: i32) -> (i32, i32) {
    %c0_i32 = arith.constant 0 : i32
    %c0_i32_0 = arith.constant 0 : i32
    %c0_i32_1 = arith.constant 0 : i32
    return %c0_i32, %c0_i32_0 : i32, i32
  }
  func.func @transform_7(%arg0: i32, %arg1: i32) -> (i32, i32) {
    %c0_i32 = arith.constant 0 : i32
    %c0_i32_0 = arith.constant 0 : i32
    return %arg0, %c0_i32 : i32, i32
  }
  func.func @transform_8(%arg0: i32, %arg1: i32) -> (i32, i32) {
    %c0_i32 = arith.constant 0 : i32
    %c0_i32_0 = arith.constant 0 : i32
    return %arg0, %c0_i32 : i32, i32
  }
  func.func @transform_9(%arg0: i32, %arg1: i32) -> (i32, i32) {
    %c0_i32 = arith.constant 0 : i32
    %c0_i32_0 = arith.constant 0 : i32
    return %arg0, %c0_i32 : i32, i32
  }
}

module attributes {stable_mosaic.version = 11 : i64} {
  func.func @apply_bn_kernel(%arg0: i32, %arg1: memref<256x128xbf16, #tpu.memory_space<vmem>>, %arg2: memref<1x128xf32, #tpu.memory_space<vmem>>, %arg3: memref<1x128xf32, #tpu.memory_space<vmem>>, %arg4: memref<256x128xf32, #tpu.memory_space<vmem>>) attributes {dimension_semantics = [#tpu.dimension_semantics<parallel>], iteration_bounds = array<i64: 1>, scalar_prefetch = 0 : i64, scratch_operands = 0 : i64, tpu.core_type = #tpu.core_type<tc>, window_params = [{transform_indices = @transform_0, window_bounds = array<i64: 256, 128>}, {pipeline_mode = #tpu.pipeline_mode<synchronous>, transform_indices = @transform_1, window_bounds = array<i64: 1, 128>}, {pipeline_mode = #tpu.pipeline_mode<synchronous>, transform_indices = @transform_2, window_bounds = array<i64: 1, 128>}, {transform_indices = @transform_3, window_bounds = array<i64: 256, 128>}]} {
    %c0 = arith.constant 0 : index
    %c0_0 = arith.constant 0 : index
    %0 = vector.load %arg1[%c0, %c0_0] : memref<256x128xbf16, #tpu.memory_space<vmem>>, vector<256x128xbf16>
    %1 = arith.extf %0 : vector<256x128xbf16> to vector<256x128xf32>
    %c0_1 = arith.constant 0 : index
    %c0_2 = arith.constant 0 : index
    %2 = vector.load %arg2[%c0_1, %c0_2] : memref<1x128xf32, #tpu.memory_space<vmem>>, vector<1x128xf32>
    %3 = vector.broadcast %2 : vector<1x128xf32> to vector<256x128xf32>
    %4 = arith.mulf %1, %3 : vector<256x128xf32>
    %c0_3 = arith.constant 0 : index
    %c0_4 = arith.constant 0 : index
    %5 = vector.load %arg3[%c0_3, %c0_4] : memref<1x128xf32, #tpu.memory_space<vmem>>, vector<1x128xf32>
    %6 = vector.broadcast %5 : vector<1x128xf32> to vector<256x128xf32>
    %7 = arith.addf %4, %6 : vector<256x128xf32>
    %c0_5 = arith.constant 0 : index
    %c0_6 = arith.constant 0 : index
    %8 = vector.load %arg4[%c0_5, %c0_6] : memref<256x128xf32, #tpu.memory_space<vmem>>, vector<256x128xf32>
    tpu.vector_store %arg4[%c0_5, %c0_6], %7 {strides = array<i32>} : memref<256x128xf32, #tpu.memory_space<vmem>>, vector<256x128xf32>,
    return
  }
  func.func @transform_0(%arg0: i32) -> (i32, i32) {
    %c0_i32 = arith.constant 0 : i32
    %c0_i32_0 = arith.constant 0 : i32
    return %arg0, %c0_i32 : i32, i32
  }
  func.func @transform_1(%arg0: i32) -> (i32, i32) {
    %c0_i32 = arith.constant 0 : i32
    %c0_i32_0 = arith.constant 0 : i32
    %c0_i32_1 = arith.constant 0 : i32
    return %c0_i32, %c0_i32_0 : i32, i32
  }
  func.func @transform_2(%arg0: i32) -> (i32, i32) {
    %c0_i32 = arith.constant 0 : i32
    %c0_i32_0 = arith.constant 0 : i32
    %c0_i32_1 = arith.constant 0 : i32
    return %c0_i32, %c0_i32_0 : i32, i32
  }
  func.func @transform_3(%arg0: i32) -> (i32, i32) {
    %c0_i32 = arith.constant 0 : i32
    %c0_i32_0 = arith.constant 0 : i32
    return %arg0, %c0_i32 : i32, i32
  }
}

</mosaic_0001>

<llo_original>
// kernel: lgcore_forward.5
$region0: #{lgcore_forward.5}
  #allocation0 [shape = 'u32[]', space=smem, size = 0x4, offset = 0x4, fixed_abs, tag = 'smem constant byte address 0x4 - core index']
  #allocation1 [shape = 'u32[144,128]{1,0:T(1,128)}', space=vmem, size = 0x12000, scoped, tag = 'internal scratch']
  %s0 = inlined_call_operand.vmem [shape: bf16[256,128], index: 0, kind: input, shape index: {}]
  %s1 = inlined_call_operand.vmem [shape: f32[1,128], index: 1, kind: input, shape index: {}]
  %s2 = inlined_call_operand.vmem [shape: f32[1,128], index: 2, kind: input, shape index: {}]
  %s3 = inlined_call_operand.hbm [shape: f32[256,128], index: 3, kind: output, shape index: {}]
  %s4 = sld [smem:[#allocation0]]
  $region22: #{lgcore_forward.5} parent=0
    _
  %s6 = ssub.s32 1, %s4
  %s7 = scalar_select 0, %s6, %s4
  $region1: #{lgcore_forward.5} parent=0
    #allocation2 [shape = 'u8[131072]{0}', space=vmem, size = 0x20000, scoped, tag = 'output window, operand 0, single buffered']
    #allocation3 [shape = 's32[1]{0}', space=sflag, size = 0x4, scoped, tag = 'scoped memory for lgcore_forward.5']
    %8 = vsyncpa [#allocation3], 0
    // Predicated region
    $region2: #{lgcore_forward.5} parent=1 // pred_check
      _
    $region3: #{lgcore_forward.5} parent=1 // pred_check_branch
      %10 = sbr.rel (0) target = $region5
    $region4: #{lgcore_forward.5} parent=1 // pred_region
      _
    $region5: #{lgcore_forward.5} parent=1 // pred_fallthru
      _
    // Predicated region
    $region6: #{lgcore_forward.5} parent=1 // pred_check
      _
    $region7: #{lgcore_forward.5} parent=1 // pred_check_branch
      %12 = sbr.rel (0) target = $region9
    $region8: #{lgcore_forward.5} parent=1 // pred_region
      _
    $region9: #{lgcore_forward.5} parent=1 // pred_fallthru
      _
    // Predicated region
    $region10: #{lgcore_forward.5} parent=1 // pred_check
      _
    $region11: #{lgcore_forward.5} parent=1 // pred_check_branch
      %14 = sbr.rel (0) target = $region13
    $region12: #{lgcore_forward.5} parent=1 // pred_region
      _
    $region13: #{lgcore_forward.5} parent=1 // pred_fallthru
      _
    %v15 = vld [vmem:[%s0] sm:$0xf]
    %v16 = vld [vmem:[%s0 + $0x4] sm:$0xf]
    %v17 = vld [vmem:[%s0 + $0x8] sm:$0xf]
    %v18 = vld [vmem:[%s0 + $0xc] sm:$0xf]
    %v19 = vld [vmem:[%s0 + $0x10] sm:$0xf]
    %v20 = vld [vmem:[%s0 + $0x14] sm:$0xf]
    %v21 = vld [vmem:[%s0 + $0x18] sm:$0xf]
    %v22 = vld [vmem:[%s0 + $0x1c] sm:$0xf]
    %v23 = vld [vmem:[%s0 + $0x20] sm:$0xf]
    %v24 = vld [vmem:[%s0 + $0x24] sm:$0xf]
    %v25 = vld [vmem:[%s0 + $0x28] sm:$0xf]
    %v26 = vld [vmem:[%s0 + $0x2c] sm:$0xf]
    %v27 = vld [vmem:[%s0 + $0x30] sm:$0xf]
    %v28 = vld [vmem:[%s0 + $0x34] sm:$0xf]
    %v29 = vld [vmem:[%s0 + $0x38] sm:$0xf]
    %v30 = vld [vmem:[%s0 + $0x3c] sm:$0xf]
    %v31 = vld [vmem:[%s0 + $0x40] sm:$0xf]
    %v32 = vld [vmem:[%s0 + $0x44] sm:$0xf]
    %v33 = vld [vmem:[%s0 + $0x48] sm:$0xf]
    %v34 = vld [vmem:[%s0 + $0x4c] sm:$0xf]
    %v35 = vld [vmem:[%s0 + $0x50] sm:$0xf]
    %v36 = vld [vmem:[%s0 + $0x54] sm:$0xf]
    %v37 = vld [vmem:[%s0 + $0x58] sm:$0xf]
    %v38 = vld [vmem:[%s0 + $0x5c] sm:$0xf]
    %v39 = vld [vmem:[%s0 + $0x60] sm:$0xf]
    %v40 = vld [vmem:[%s0 + $0x64] sm:$0xf]
    %v41 = vld [vmem:[%s0 + $0x68] sm:$0xf]
    %v42 = vld [vmem:[%s0 + $0x6c] sm:$0xf]
    %v43 = vld [vmem:[%s0 + $0x70] sm:$0xf]
    %v44 = vld [vmem:[%s0 + $0x74] sm:$0xf]
    %v45 = vld [vmem:[%s0 + $0x78] sm:$0xf]
    %v46 = vld [vmem:[%s0 + $0x7c] sm:$0xf]
    %v47 = vunpack.c.l.bf16 %v15
    %v48 = vunpack.c.l.bf16 %v16
    %v49 = vunpack.c.l.bf16 %v17
    %v50 = vunpack.c.l.bf16 %v18
    %v51 = vunpack.c.l.bf16 %v19
    %v52 = vunpack.c.l.bf16 %v20
    %v53 = vunpack.c.l.bf16 %v21
    %v54 = vunpack.c.l.bf16 %v22
    %v55 = vunpack.c.l.bf16 %v23
    %v56 = vunpack.c.l.bf16 %v24
    %v57 = vunpack.c.l.bf16 %v25
    %v58 = vunpack.c.l.bf16 %v26
    %v59 = vunpack.c.l.bf16 %v27
    %v60 = vunpack.c.l.bf16 %v28
    %v61 = vunpack.c.l.bf16 %v29
    %v62 = vunpack.c.l.bf16 %v30
    %v63 = vunpack.c.l.bf16 %v31
    %v64 = vunpack.c.l.bf16 %v32
    %v65 = vunpack.c.l.bf16 %v33
    %v66 = vunpack.c.l.bf16 %v34
    %v67 = vunpack.c.l.bf16 %v35
    %v68 = vunpack.c.l.bf16 %v36
    %v69 = vunpack.c.l.bf16 %v37
    %v70 = vunpack.c.l.bf16 %v38
    %v71 = vunpack.c.l.bf16 %v39
    %v72 = vunpack.c.l.bf16 %v40
    %v73 = vunpack.c.l.bf16 %v41
    %v74 = vunpack.c.l.bf16 %v42
    %v75 = vunpack.c.l.bf16 %v43
    %v76 = vunpack.c.l.bf16 %v44
    %v77 = vunpack.c.l.bf16 %v45
    %v78 = vunpack.c.l.bf16 %v46
    %v79 = vld [vmem:[%s1] sm:$0x1]
    %v81 = vlaneseq
    %v82 = vshrl.u32 %v81, 7
    %v83 = vsub.s32 0, %v82
    %v84 = vrot.slane %v79, %v83
    %v86 = vmul.f32 %v47, %v84
    %v87 = vmul.f32 %v48, %v84
    %v88 = vmul.f32 %v49, %v84
    %v89 = vmul.f32 %v50, %v84
    %v90 = vmul.f32 %v51, %v84
    %v91 = vmul.f32 %v52, %v84
    %v92 = vmul.f32 %v53, %v84
    %v93 = vmul.f32 %v54, %v84
    %v94 = vmul.f32 %v55, %v84
    %v95 = vmul.f32 %v56, %v84
    %v96 = vmul.f32 %v57, %v84
    %v97 = vmul.f32 %v58, %v84
    %v98 = vmul.f32 %v59, %v84
    %v99 = vmul.f32 %v60, %v84
    %v100 = vmul.f32 %v61, %v84
    %v101 = vmul.f32 %v62, %v84
    %v102 = vmul.f32 %v63, %v84
    %v103 = vmul.f32 %v64, %v84
    %v104 = vmul.f32 %v65, %v84
    %v105 = vmul.f32 %v66, %v84
    %v106 = vmul.f32 %v67, %v84
    %v107 = vmul.f32 %v68, %v84
    %v108 = vmul.f32 %v69, %v84
    %v109 = vmul.f32 %v70, %v84
    %v110 = vmul.f32 %v71, %v84
    %v111 = vmul.f32 %v72, %v84
    %v112 = vmul.f32 %v73, %v84
    %v113 = vmul.f32 %v74, %v84
    %v114 = vmul.f32 %v75, %v84
    %v115 = vmul.f32 %v76, %v84
    %v116 = vmul.f32 %v77, %v84
    %v117 = vmul.f32 %v78, %v84
    %v118 = vld [vmem:[%s2] sm:$0x1]
    %v120 = vlaneseq
    %v121 = vshrl.u32 %v120, 7
    %v122 = vsub.s32 0, %v121
    %v123 = vrot.slane %v118, %v122
    %v125 = vadd.f32 %v86, %v123
    %v126 = vadd.f32 %v87, %v123
    %v127 = vadd.f32 %v88, %v123
    %v128 = vadd.f32 %v89, %v123
    %v129 = vadd.f32 %v90, %v123
    %v130 = vadd.f32 %v91, %v123
    %v131 = vadd.f32 %v92, %v123
    %v132 = vadd.f32 %v93, %v123
    %v133 = vadd.f32 %v94, %v123
    %v134 = vadd.f32 %v95, %v123
    %v135 = vadd.f32 %v96, %v123
    %v136 = vadd.f32 %v97, %v123
    %v137 = vadd.f32 %v98, %v123
    %v138 = vadd.f32 %v99, %v123
    %v139 = vadd.f32 %v100, %v123
    %v140 = vadd.f32 %v101, %v123
    %v141 = vadd.f32 %v102, %v123
    %v142 = vadd.f32 %v103, %v123
    %v143 = vadd.f32 %v104, %v123
    %v144 = vadd.f32 %v105, %v123
    %v145 = vadd.f32 %v106, %v123
    %v146 = vadd.f32 %v107, %v123
    %v147 = vadd.f32 %v108, %v123
    %v148 = vadd.f32 %v109, %v123
    %v149 = vadd.f32 %v110, %v123
    %v150 = vadd.f32 %v111, %v123
    %v151 = vadd.f32 %v112, %v123
    %v152 = vadd.f32 %v113, %v123
    %v153 = vadd.f32 %v114, %v123
    %v154 = vadd.f32 %v115, %v123
    %v155 = vadd.f32 %v116, %v123
    %v156 = vadd.f32 %v117, %v123
    %157 = vst [vmem:[#allocation2] sm:$0xff] %v125
    %158 = vst [vmem:[#allocation2 + $0x8] sm:$0xff] %v126
    %159 = vst [vmem:[#allocation2 + $0x10] sm:$0xff] %v127
    %160 = vst [vmem:[#allocation2 + $0x18] sm:$0xff] %v128
    %161 = vst [vmem:[#allocation2 + $0x20] sm:$0xff] %v129
    %162 = vst [vmem:[#allocation2 + $0x28] sm:$0xff] %v130
    %163 = vst [vmem:[#allocation2 + $0x30] sm:$0xff] %v131
    %164 = vst [vmem:[#allocation2 + $0x38] sm:$0xff] %v132
    %165 = vst [vmem:[#allocation2 + $0x40] sm:$0xff] %v133
    %166 = vst [vmem:[#allocation2 + $0x48] sm:$0xff] %v134
    %167 = vst [vmem:[#allocation2 + $0x50] sm:$0xff] %v135
    %168 = vst [vmem:[#allocation2 + $0x58] sm:$0xff] %v136
    %169 = vst [vmem:[#allocation2 + $0x60] sm:$0xff] %v137
    %170 = vst [vmem:[#allocation2 + $0x68] sm:$0xff] %v138
    %171 = vst [vmem:[#allocation2 + $0x70] sm:$0xff] %v139
    %172 = vst [vmem:[#allocation2 + $0x78] sm:$0xff] %v140
    %173 = vst [vmem:[#allocation2 + $0x80] sm:$0xff] %v141
    %174 = vst [vmem:[#allocation2 + $0x88] sm:$0xff] %v142
    %175 = vst [vmem:[#allocation2 + $0x90] sm:$0xff] %v143
    %176 = vst [vmem:[#allocation2 + $0x98] sm:$0xff] %v144
    %177 = vst [vmem:[#allocation2 + $0xa0] sm:$0xff] %v145
    %178 = vst [vmem:[#allocation2 + $0xa8] sm:$0xff] %v146
    %179 = vst [vmem:[#allocation2 + $0xb0] sm:$0xff] %v147
    %180 = vst [vmem:[#allocation2 + $0xb8] sm:$0xff] %v148
    %181 = vst [vmem:[#allocation2 + $0xc0] sm:$0xff] %v149
    %182 = vst [vmem:[#allocation2 + $0xc8] sm:$0xff] %v150
    %183 = vst [vmem:[#allocation2 + $0xd0] sm:$0xff] %v151
    %184 = vst [vmem:[#allocation2 + $0xd8] sm:$0xff] %v152
    %185 = vst [vmem:[#allocation2 + $0xe0] sm:$0xff] %v153
    %186 = vst [vmem:[#allocation2 + $0xe8] sm:$0xff] %v154
    %187 = vst [vmem:[#allocation2 + $0xf0] sm:$0xff] %v155
    %188 = vst [vmem:[#allocation2 + $0xf8] sm:$0xff] %v156
    // Predicated region
    $region14: #{lgcore_forward.5} parent=1 // pred_check
      _
    $region15: #{lgcore_forward.5} parent=1 // pred_check_branch
      %190 = sbr.rel (0) target = $region17
    $region16: #{lgcore_forward.5} parent=1 // pred_region
      %s192 = ssub.s32 4096, 4096
      %193 = vsyncadd [#allocation3], %s192
      %s194 = sshll.u32 [#allocation2], 4
      %s195 = int_to_ptr.vmem [resolvable:$true] %s194
      %200 = dma.vmem_to_hbm [thread:$0]  %s195, 4096, %s3, [#allocation3], 128, 128, 8
    $region17: #{lgcore_forward.5} parent=1 // pred_fallthru
      _
    // Predicated region
    $region18: #{lgcore_forward.5} parent=1 // pred_check
      _
    $region19: #{lgcore_forward.5} parent=1 // pred_check_branch
      %202 = sbr.rel (0) target = $region21
    $region20: #{lgcore_forward.5} parent=1 // pred_region
      %203 = dma.done [#allocation3], 4096
    $region21: #{lgcore_forward.5} parent=1 // pred_fallthru
      _
    %204 = vsyncpa [#allocation3], 1

// kernel: lgcore_forward.3
$region0: #{lgcore_forward.3}
  #allocation0 [shape = 'u32[]', space=smem, size = 0x4, offset = 0x4, fixed_abs, tag = 'smem constant byte address 0x4 - core index']
  #allocation1 [shape = 'u32[144,128]{1,0:T(1,128)}', space=vmem, size = 0x12000, scoped, tag = 'internal scratch']
  %s0 = inlined_call_operand.vmem [shape: bf16[256,96], index: 0, kind: input, shape index: {}]
  %s1 = inlined_call_operand.vmem [shape: bf16[96,128], index: 1, kind: input, shape index: {}]
  %s2 = inlined_call_operand.vmem [shape: f32[256,1], index: 2, kind: input, shape index: {}]
  %s3 = inlined_call_operand.vmem [shape: bf16[256,128], index: 3, kind: output, shape index: {}]
  %s4 = sld [smem:[#allocation0]]
  $region22: #{lgcore_forward.3} parent=0
    _
  %s6 = ssub.s32 1, %s4
  %s7 = scalar_select 0, %s6, %s4
  // Predicated region
  $region2: #{lgcore_forward.3} parent=0 // pred_check
    _
  $region3: #{lgcore_forward.3} parent=0 // pred_check_branch
    %9 = sbr.rel (0) target = $region5
  $region4: #{lgcore_forward.3} parent=0 // pred_region
    _
  $region5: #{lgcore_forward.3} parent=0 // pred_fallthru
    _
  // Predicated region
  $region6: #{lgcore_forward.3} parent=0 // pred_check
    _
  $region7: #{lgcore_forward.3} parent=0 // pred_check_branch
    %11 = sbr.rel (0) target = $region9
  $region8: #{lgcore_forward.3} parent=0 // pred_region
    _
  $region9: #{lgcore_forward.3} parent=0 // pred_fallthru
    _
  // Predicated region
  $region10: #{lgcore_forward.3} parent=0 // pred_check
    _
  $region11: #{lgcore_forward.3} parent=0 // pred_check_branch
    %13 = sbr.rel (0) target = $region13
  $region12: #{lgcore_forward.3} parent=0 // pred_region
    _
  $region13: #{lgcore_forward.3} parent=0 // pred_fallthru
    _
  %v15 = vld [vmem:[%s0] sm:$0xf]
  %v16 = vld [vmem:[%s0 + $0x4] sm:$0xf]
  %v17 = vld [vmem:[%s0 + $0x8] sm:$0xf]
  %v18 = vld [vmem:[%s0 + $0xc] sm:$0xf]
  %v19 = vld [vmem:[%s0 + $0x10] sm:$0xf]
  %v20 = vld [vmem:[%s0 + $0x14] sm:$0xf]
  %v21 = vld [vmem:[%s0 + $0x18] sm:$0xf]
  %v22 = vld [vmem:[%s0 + $0x1c] sm:$0xf]
  %v23 = vld [vmem:[%s0 + $0x20] sm:$0xf]
  %v24 = vld [vmem:[%s0 + $0x24] sm:$0xf]
  %v25 = vld [vmem:[%s0 + $0x28] sm:$0xf]
  %v26 = vld [vmem:[%s0 + $0x2c] sm:$0xf]
  %v27 = vld [vmem:[%s0 + $0x30] sm:$0xf]
  %v28 = vld [vmem:[%s0 + $0x34] sm:$0xf]
  %v29 = vld [vmem:[%s0 + $0x38] sm:$0xf]
  %v30 = vld [vmem:[%s0 + $0x3c] sm:$0xf]
  %v31 = vld [vmem:[%s0 + $0x40] sm:$0xf]
  %v32 = vld [vmem:[%s0 + $0x44] sm:$0xf]
  %v33 = vld [vmem:[%s0 + $0x48] sm:$0xf]
  %v34 = vld [vmem:[%s0 + $0x4c] sm:$0xf]
  %v35 = vld [vmem:[%s0 + $0x50] sm:$0xf]
  %v36 = vld [vmem:[%s0 + $0x54] sm:$0xf]
  %v37 = vld [vmem:[%s0 + $0x58] sm:$0xf]
  %v38 = vld [vmem:[%s0 + $0x5c] sm:$0xf]
  %v39 = vld [vmem:[%s0 + $0x60] sm:$0xf]
  %v40 = vld [vmem:[%s0 + $0x64] sm:$0xf]
  %v41 = vld [vmem:[%s0 + $0x68] sm:$0xf]
  %v42 = vld [vmem:[%s0 + $0x6c] sm:$0xf]
  %v43 = vld [vmem:[%s0 + $0x70] sm:$0xf]
  %v44 = vld [vmem:[%s0 + $0x74] sm:$0xf]
  %v45 = vld [vmem:[%s0 + $0x78] sm:$0xf]
  %v46 = vld [vmem:[%s0 + $0x7c] sm:$0xf]
  %v47 = vld [vmem:[%s1] sm:$0xf]
  %v48 = vld [vmem:[%s1 + $0x4] sm:$0xf]
  %v49 = vld [vmem:[%s1 + $0x8] sm:$0xf]
  %v50 = vld [vmem:[%s1 + $0xc] sm:$0xf]
  %v51 = vld [vmem:[%s1 + $0x10] sm:$0xf]
  %v52 = vld [vmem:[%s1 + $0x14] sm:$0xf]
  %v53 = vld [vmem:[%s1 + $0x18] sm:$0xf]
  %v54 = vld [vmem:[%s1 + $0x1c] sm:$0xf]
  %v55 = vld [vmem:[%s1 + $0x20] sm:$0xf]
  %v56 = vld [vmem:[%s1 + $0x24] sm:$0xf]
  %v57 = vld [vmem:[%s1 + $0x28] sm:$0xf]
  %v58 = vld [vmem:[%s1 + $0x2c] sm:$0xf]
  %v91 = vunpack.c.l.b16 %v15
  %v92 = vunpack.c.l.b16 %v16
  %v93 = vunpack.c.l.b16 %v17
  %v94 = vunpack.c.l.b16 %v18
  %v95 = vunpack.c.l.b16 %v19
  %v96 = vunpack.c.l.b16 %v20
  %v97 = vunpack.c.l.b16 %v21
  %v98 = vunpack.c.l.b16 %v22
  %v99 = vunpack.c.l.b16 %v23
  %v100 = vunpack.c.l.b16 %v24
  %v101 = vunpack.c.l.b16 %v25
  %v102 = vunpack.c.l.b16 %v26
  %v103 = vunpack.c.l.b16 %v27
  %v104 = vunpack.c.l.b16 %v28
  %v105 = vunpack.c.l.b16 %v29
  %v106 = vunpack.c.l.b16 %v30
  %v107 = vunpack.c.l.b16 %v31
  %v108 = vunpack.c.l.b16 %v32
  %v109 = vunpack.c.l.b16 %v33
  %v110 = vunpack.c.l.b16 %v34
  %v111 = vunpack.c.l.b16 %v35
  %v112 = vunpack.c.l.b16 %v36
  %v113 = vunpack.c.l.b16 %v37
  %v114 = vunpack.c.l.b16 %v38
  %v115 = vunpack.c.l.b16 %v39
  %v116 = vunpack.c.l.b16 %v40
  %v117 = vunpack.c.l.b16 %v41
  %v118 = vunpack.c.l.b16 %v42
  %v119 = vunpack.c.l.b16 %v43
  %v120 = vunpack.c.l.b16 %v44
  %v121 = vunpack.c.l.b16 %v45
  %v122 = vunpack.c.l.b16 %v46
  %v123 = vpack.c.b16 %v92, %v91
  %v124 = vpack.c.b16 %v94, %v93
  %v125 = vpack.c.b16 %v96, %v95
  %v126 = vpack.c.b16 %v98, %v97
  %v127 = vpack.c.b16 %v100, %v99
  %v128 = vpack.c.b16 %v102, %v101
  %v129 = vpack.c.b16 %v104, %v103
  %v130 = vpack.c.b16 %v106, %v105
  %v131 = vpack.c.b16 %v108, %v107
  %v132 = vpack.c.b16 %v110, %v109
  %v133 = vpack.c.b16 %v112, %v111
  %v134 = vpack.c.b16 %v114, %v113
  %v135 = vpack.c.b16 %v116, %v115
  %v136 = vpack.c.b16 %v118, %v117
  %v137 = vpack.c.b16 %v120, %v119
  %v138 = vpack.c.b16 %v122, %v121
  %v151 = vunpack.c.l.b16 %v47
  %v152 = vunpack.c.l.b16 %v48
  %v153 = vunpack.c.l.b16 %v49
  %v154 = vunpack.c.l.b16 %v50
  %v155 = vunpack.c.l.b16 %v51
  %v156 = vunpack.c.l.b16 %v52
  %v157 = vunpack.c.l.b16 %v53
  %v158 = vunpack.c.l.b16 %v54
  %v159 = vunpack.c.l.b16 %v55
  %v160 = vunpack.c.l.b16 %v56
  %v161 = vunpack.c.l.b16 %v57
  %v162 = vunpack.c.l.b16 %v58
  %v163 = vpack.c.b16 %v152, %v151
  %v164 = vpack.c.b16 %v154, %v153
  %v165 = vpack.c.b16 %v156, %v155
  %v166 = vpack.c.b16 %v158, %v157
  %v167 = vpack.c.b16 %v160, %v159
  %v168 = vpack.c.b16 %v162, %v161
  %vm175 = vcmask 785408
  %v177 = vsel %vm175, %v123, 0
  %v180 = vsel %vm175, %v124, 0
  %v183 = vsel %vm175, %v125, 0
  %v186 = vsel %vm175, %v126, 0
  %v189 = vsel %vm175, %v127, 0
  %v192 = vsel %vm175, %v128, 0
  %v195 = vsel %vm175, %v129, 0
  %v198 = vsel %vm175, %v130, 0
  %v201 = vsel %vm175, %v131, 0
  %v204 = vsel %vm175, %v132, 0
  %v207 = vsel %vm175, %v133, 0
  %v210 = vsel %vm175, %v134, 0
  %v213 = vsel %vm175, %v135, 0
  %v216 = vsel %vm175, %v136, 0
  %v219 = vsel %vm175, %v137, 0
  %v222 = vsel %vm175, %v138, 0
  %224 = vmatprep.subr.bf16.mxu0 0
  %225 = vmatpush1.bf16.msra.mxu0 %v163
  %226 = vmatprep.subr.bf16.mxu0 0
  %227 = vmatpush1.bf16.msra.mxu0 %v164
  %228 = vmatprep.subr.bf16.mxu0 0
  %229 = vmatpush1.bf16.msra.mxu0 %v165
  %230 = vmatprep.subr.bf16.mxu0 0
  %231 = vmatpush1.bf16.msra.mxu0 %v166
  %232 = vmatprep.subr.bf16.mxu0 0
  %233 = vmatpush1.bf16.msra.mxu0 %v167
  %234 = vmatprep.subr.bf16.mxu0 0
  %235 = vmatpush1.bf16.msra.mxu0 %v168
  %236 = vmatprep.subr.bf16.mxu0 0
  %237 = vmatpush1.bf16.msra.mxu0 0
  %238 = vmatprep.subr.bf16.mxu0 0
  %239 = vmatpush1.bf16.msra.mxu0 0
  %240 = vmatprep.subr.bf16.mxu0 0
  %241 = vmatpush1.bf16.msra.mxu0 0
  %242 = vmatprep.subr.bf16.mxu0 0
  %243 = vmatpush1.bf16.msra.mxu0 0
  %244 = vmatprep.subr.bf16.mxu0 0
  %245 = vmatpush1.bf16.msra.mxu0 0
  %246 = vmatprep.subr.bf16.mxu0 0
  %247 = vmatpush1.bf16.msra.mxu0 0
  %248 = vmatprep.subr.bf16.mxu0 0
  %249 = vmatpush1.bf16.msra.mxu0 0
  %250 = vmatprep.subr.bf16.mxu0 0
  %251 = vmatpush1.bf16.msra.mxu0 0
  %252 = vmatprep.subr.bf16.mxu0 0
  %253 = vmatpush1.bf16.msra.mxu0 0
  %254 = vmatprep.subr.bf16.mxu0 0
  %255 = vmatpush1.bf16.msra.mxu0 0
  %256 = vmatprep.mubr.bf16.mxu0 0
  %257 = vmatmul.mubr.bf16.gmra.mrb[0].mxu0 %v177
  %v258 = vpop.f32.mrb[0].mxu0
  %v259 = vadd.f32 0.0, %v258
  %v260 = vpop.f32.mrb[0].mxu0
  %v261 = vpop.f32.mrb[0].mxu0
  %v262 = vadd.f32 0.0, %v261
  %v263 = vpop.f32.mrb[0].mxu0
  %264 = vmatprep.mubr.bf16.mxu0 0
  %265 = vmatmul.mubr.bf16.gmra.mrb[0].mxu0 %v180
  %v266 = vpop.f32.mrb[0].mxu0
  %v267 = vadd.f32 0.0, %v266
  %v268 = vpop.f32.mrb[0].mxu0
  %v269 = vpop.f32.mrb[0].mxu0
  %v270 = vadd.f32 0.0, %v269
  %v271 = vpop.f32.mrb[0].mxu0
  %272 = vmatprep.mubr.bf16.mxu0 0
  %273 = vmatmul.mubr.bf16.gmra.mrb[0].mxu0 %v183
  %v274 = vpop.f32.mrb[0].mxu0
  %v275 = vadd.f32 0.0, %v274
  %v276 = vpop.f32.mrb[0].mxu0
  %v277 = vpop.f32.mrb[0].mxu0
  %v278 = vadd.f32 0.0, %v277
  %v279 = vpop.f32.mrb[0].mxu0
  %280 = vmatprep.mubr.bf16.mxu0 0
  %281 = vmatmul.mubr.bf16.gmra.mrb[0].mxu0 %v186
  %v282 = vpop.f32.mrb[0].mxu0
  %v283 = vadd.f32 0.0, %v282
  %v284 = vpop.f32.mrb[0].mxu0
  %v285 = vpop.f32.mrb[0].mxu0
  %v286 = vadd.f32 0.0, %v285
  %v287 = vpop.f32.mrb[0].mxu0
  %288 = vmatprep.mubr.bf16.mxu0 0
  %289 = vmatmul.mubr.bf16.gmra.mrb[0].mxu0 %v189
  %v290 = vpop.f32.mrb[0].mxu0
  %v291 = vadd.f32 0.0, %v290
  %v292 = vpop.f32.mrb[0].mxu0
  %v293 = vpop.f32.mrb[0].mxu0
  %v294 = vadd.f32 0.0, %v293
  %v295 = vpop.f32.mrb[0].mxu0
  %296 = vmatprep.mubr.bf16.mxu0 0
  %297 = vmatmul.mubr.bf16.gmra.mrb[0].mxu0 %v192
  %v298 = vpop.f32.mrb[0].mxu0
  %v299 = vadd.f32 0.0, %v298
  %v300 = vpop.f32.mrb[0].mxu0
  %v301 = vpop.f32.mrb[0].mxu0
  %v302 = vadd.f32 0.0, %v301
  %v303 = vpop.f32.mrb[0].mxu0
  %304 = vmatprep.mubr.bf16.mxu0 0
  %305 = vmatmul.mubr.bf16.gmra.mrb[0].mxu0 %v195
  %v306 = vpop.f32.mrb[0].mxu0
  %v307 = vadd.f32 0.0, %v306
  %v308 = vpop.f32.mrb[0].mxu0
  %v309 = vpop.f32.mrb[0].mxu0
  %v310 = vadd.f32 0.0, %v309
  %v311 = vpop.f32.mrb[0].mxu0
  %312 = vmatprep.mubr.bf16.mxu0 0
  %313 = vmatmul.mubr.bf16.gmra.mrb[0].mxu0 %v198
  %v314 = vpop.f32.mrb[0].mxu0
  %v315 = vadd.f32 0.0, %v314
  %v316 = vpop.f32.mrb[0].mxu0
  %v317 = vpop.f32.mrb[0].mxu0
  %v318 = vadd.f32 0.0, %v317
  %v319 = vpop.f32.mrb[0].mxu0
  %320 = vmatprep.mubr.bf16.mxu0 0
  %321 = vmatmul.mubr.bf16.gmra.mrb[0].mxu0 %v201
  %v322 = vpop.f32.mrb[0].mxu0
  %v323 = vadd.f32 0.0, %v322
  %v324 = vpop.f32.mrb[0].mxu0
  %v325 = vpop.f32.mrb[0].mxu0
  %v326 = vadd.f32 0.0, %v325
  %v327 = vpop.f32.mrb[0].mxu0
  %328 = vmatprep.mubr.bf16.mxu0 0
  %329 = vmatmul.mubr.bf16.gmra.mrb[0].mxu0 %v204
  %v330 = vpop.f32.mrb[0].mxu0
  %v331 = vadd.f32 0.0, %v330
  %v332 = vpop.f32.mrb[0].mxu0
  %v333 = vpop.f32.mrb[0].mxu0
  %v334 = vadd.f32 0.0, %v333
  %v335 = vpop.f32.mrb[0].mxu0
  %336 = vmatprep.mubr.bf16.mxu0 0
  %337 = vmatmul.mubr.bf16.gmra.mrb[0].mxu0 %v207
  %v338 = vpop.f32.mrb[0].mxu0
  %v339 = vadd.f32 0.0, %v338
  %v340 = vpop.f32.mrb[0].mxu0
  %v341 = vpop.f32.mrb[0].mxu0
  %v342 = vadd.f32 0.0, %v341
  %v343 = vpop.f32.mrb[0].mxu0
  %344 = vmatprep.mubr.bf16.mxu0 0
  %345 = vmatmul.mubr.bf16.gmra.mrb[0].mxu0 %v210
  %v346 = vpop.f32.mrb[0].mxu0
  %v347 = vadd.f32 0.0, %v346
  %v348 = vpop.f32.mrb[0].mxu0
  %v349 = vpop.f32.mrb[0].mxu0
  %v350 = vadd.f32 0.0, %v349
  %v351 = vpop.f32.mrb[0].mxu0
  %352 = vmatprep.mubr.bf16.mxu0 0
  %353 = vmatmul.mubr.bf16.gmra.mrb[0].mxu0 %v213
  %v354 = vpop.f32.mrb[0].mxu0
  %v355 = vadd.f32 0.0, %v354
  %v356 = vpop.f32.mrb[0].mxu0
  %v357 = vpop.f32.mrb[0].mxu0
  %v358 = vadd.f32 0.0, %v357
  %v359 = vpop.f32.mrb[0].mxu0
  %360 = vmatprep.mubr.bf16.mxu0 0
  %361 = vmatmul.mubr.bf16.gmra.mrb[0].mxu0 %v216
  %v362 = vpop.f32.mrb[0].mxu0
  %v363 = vadd.f32 0.0, %v362
  %v364 = vpop.f32.mrb[0].mxu0
  %v365 = vpop.f32.mrb[0].mxu0
  %v366 = vadd.f32 0.0, %v365
  %v367 = vpop.f32.mrb[0].mxu0
  %368 = vmatprep.mubr.bf16.mxu0 0
  %369 = vmatmul.mubr.bf16.gmra.mrb[0].mxu0 %v219
  %v370 = vpop.f32.mrb[0].mxu0
  %v371 = vadd.f32 0.0, %v370
  %v372 = vpop.f32.mrb[0].mxu0
  %v373 = vpop.f32.mrb[0].mxu0
  %v374 = vadd.f32 0.0, %v373
  %v375 = vpop.f32.mrb[0].mxu0
  %376 = vmatprep.mubr.bf16.mxu0 0
  %377 = vmatmul.mubr.bf16.gmra.mrb[0].mxu0 %v222
  %v378 = vpop.f32.mrb[0].mxu0
  %v379 = vadd.f32 0.0, %v378
  %v380 = vpop.f32.mrb[0].mxu0
  %v381 = vpop.f32.mrb[0].mxu0
  %v382 = vadd.f32 0.0, %v381
  %v383 = vpop.f32.mrb[0].mxu0
  %384 = vdwg.mxu0
  %v385 = vld [vmem:[%s2] sm:$0xff]
  %v386 = vld [vmem:[%s2 + $0x8] sm:$0xff]
  %v387 = vld [vmem:[%s2 + $0x10] sm:$0xff]
  %v388 = vld [vmem:[%s2 + $0x18] sm:$0xff]
  %v389 = vld [vmem:[%s2 + $0x20] sm:$0xff]
  %v390 = vld [vmem:[%s2 + $0x28] sm:$0xff]
  %v391 = vld [vmem:[%s2 + $0x30] sm:$0xff]
  %v392 = vld [vmem:[%s2 + $0x38] sm:$0xff]
  %v393 = vld [vmem:[%s2 + $0x40] sm:$0xff]
  %v394 = vld [vmem:[%s2 + $0x48] sm:$0xff]
  %v395 = vld [vmem:[%s2 + $0x50] sm:$0xff]
  %v396 = vld [vmem:[%s2 + $0x58] sm:$0xff]
  %v397 = vld [vmem:[%s2 + $0x60] sm:$0xff]
  %v398 = vld [vmem:[%s2 + $0x68] sm:$0xff]
  %v399 = vld [vmem:[%s2 + $0x70] sm:$0xff]
  %v400 = vld [vmem:[%s2 + $0x78] sm:$0xff]
  %v401 = vld [vmem:[%s2 + $0x80] sm:$0xff]
  %v402 = vld [vmem:[%s2 + $0x88] sm:$0xff]
  %v403 = vld [vmem:[%s2 + $0x90] sm:$0xff]
  %v404 = vld [vmem:[%s2 + $0x98] sm:$0xff]
  %v405 = vld [vmem:[%s2 + $0xa0] sm:$0xff]
  %v406 = vld [vmem:[%s2 + $0xa8] sm:$0xff]
  %v407 = vld [vmem:[%s2 + $0xb0] sm:$0xff]
  %v408 = vld [vmem:[%s2 + $0xb8] sm:$0xff]
  %v409 = vld [vmem:[%s2 + $0xc0] sm:$0xff]
  %v410 = vld [vmem:[%s2 + $0xc8] sm:$0xff]
  %v411 = vld [vmem:[%s2 + $0xd0] sm:$0xff]
  %v412 = vld [vmem:[%s2 + $0xd8] sm:$0xff]
  %v413 = vld [vmem:[%s2 + $0xe0] sm:$0xff]
  %v414 = vld [vmem:[%s2 + $0xe8] sm:$0xff]
  %v415 = vld [vmem:[%s2 + $0xf0] sm:$0xff]
  %v416 = vld [vmem:[%s2 + $0xf8] sm:$0xff]
  %418 = vset.pattern.permute.xlu0 0
  %419 = vperm.xlu0 %418, %v385
  %v420 = vpop.permute.xlu0 %419
  %423 = vset.pattern.permute.xlu0 0
  %424 = vperm.xlu0 %423, %v386
  %v425 = vpop.permute.xlu0 %424
  %428 = vset.pattern.permute.xlu0 0
  %429 = vperm.xlu0 %428, %v387
  %v430 = vpop.permute.xlu0 %429
  %433 = vset.pattern.permute.xlu0 0
  %434 = vperm.xlu0 %433, %v388
  %v435 = vpop.permute.xlu0 %434
  %438 = vset.pattern.permute.xlu0 0
  %439 = vperm.xlu0 %438, %v389
  %v440 = vpop.permute.xlu0 %439
  %443 = vset.pattern.permute.xlu0 0
  %444 = vperm.xlu0 %443, %v390
  %v445 = vpop.permute.xlu0 %444
  %448 = vset.pattern.permute.xlu0 0
  %449 = vperm.xlu0 %448, %v391
  %v450 = vpop.permute.xlu0 %449
  %453 = vset.pattern.permute.xlu0 0
  %454 = vperm.xlu0 %453, %v392
  %v455 = vpop.permute.xlu0 %454
  %458 = vset.pattern.permute.xlu0 0
  %459 = vperm.xlu0 %458, %v393
  %v460 = vpop.permute.xlu0 %459
  %463 = vset.pattern.permute.xlu0 0
  %464 = vperm.xlu0 %463, %v394
  %v465 = vpop.permute.xlu0 %464
  %468 = vset.pattern.permute.xlu0 0
  %469 = vperm.xlu0 %468, %v395
  %v470 = vpop.permute.xlu0 %469
  %473 = vset.pattern.permute.xlu0 0
  %474 = vperm.xlu0 %473, %v396
  %v475 = vpop.permute.xlu0 %474
  %478 = vset.pattern.permute.xlu0 0
  %479 = vperm.xlu0 %478, %v397
  %v480 = vpop.permute.xlu0 %479
  %483 = vset.pattern.permute.xlu0 0
  %484 = vperm.xlu0 %483, %v398
  %v485 = vpop.permute.xlu0 %484
  %488 = vset.pattern.permute.xlu0 0
  %489 = vperm.xlu0 %488, %v399
  %v490 = vpop.permute.xlu0 %489
  %493 = vset.pattern.permute.xlu0 0
  %494 = vperm.xlu0 %493, %v400
  %v495 = vpop.permute.xlu0 %494
  %498 = vset.pattern.permute.xlu0 0
  %499 = vperm.xlu0 %498, %v401
  %v500 = vpop.permute.xlu0 %499
  %503 = vset.pattern.permute.xlu0 0
  %504 = vperm.xlu0 %503, %v402
  %v505 = vpop.permute.xlu0 %504
  %508 = vset.pattern.permute.xlu0 0
  %509 = vperm.xlu0 %508, %v403
  %v510 = vpop.permute.xlu0 %509
  %513 = vset.pattern.permute.xlu0 0
  %514 = vperm.xlu0 %513, %v404
  %v515 = vpop.permute.xlu0 %514
  %518 = vset.pattern.permute.xlu0 0
  %519 = vperm.xlu0 %518, %v405
  %v520 = vpop.permute.xlu0 %519
  %523 = vset.pattern.permute.xlu0 0
  %524 = vperm.xlu0 %523, %v406
  %v525 = vpop.permute.xlu0 %524
  %528 = vset.pattern.permute.xlu0 0
  %529 = vperm.xlu0 %528, %v407
  %v530 = vpop.permute.xlu0 %529
  %533 = vset.pattern.permute.xlu0 0
  %534 = vperm.xlu0 %533, %v408
  %v535 = vpop.permute.xlu0 %534
  %538 = vset.pattern.permute.xlu0 0
  %539 = vperm.xlu0 %538, %v409
  %v540 = vpop.permute.xlu0 %539
  %543 = vset.pattern.permute.xlu0 0
  %544 = vperm.xlu0 %543, %v410
  %v545 = vpop.permute.xlu0 %544
  %548 = vset.pattern.permute.xlu0 0
  %549 = vperm.xlu0 %548, %v411
  %v550 = vpop.permute.xlu0 %549
  %553 = vset.pattern.permute.xlu0 0
  %554 = vperm.xlu0 %553, %v412
  %v555 = vpop.permute.xlu0 %554
  %558 = vset.pattern.permute.xlu0 0
  %559 = vperm.xlu0 %558, %v413
  %v560 = vpop.permute.xlu0 %559
  %563 = vset.pattern.permute.xlu0 0
  %564 = vperm.xlu0 %563, %v414
  %v565 = vpop.permute.xlu0 %564
  %568 = vset.pattern.permute.xlu0 0
  %569 = vperm.xlu0 %568, %v415
  %v570 = vpop.permute.xlu0 %569
  %573 = vset.pattern.permute.xlu0 0
  %574 = vperm.xlu0 %573, %v416
  %v575 = vpop.permute.xlu0 %574
  %v577 = vmul.f32 %v420, %v259
  %v578 = vmul.f32 %v425, %v262
  %v579 = vmul.f32 %v430, %v267
  %v580 = vmul.f32 %v435, %v270
  %v581 = vmul.f32 %v440, %v275
  %v582 = vmul.f32 %v445, %v278
  %v583 = vmul.f32 %v450, %v283
  %v584 = vmul.f32 %v455, %v286
  %v585 = vmul.f32 %v460, %v291
  %v586 = vmul.f32 %v465, %v294
  %v587 = vmul.f32 %v470, %v299
  %v588 = vmul.f32 %v475, %v302
  %v589 = vmul.f32 %v480, %v307
  %v590 = vmul.f32 %v485, %v310
  %v591 = vmul.f32 %v490, %v315
  %v592 = vmul.f32 %v495, %v318
  %v593 = vmul.f32 %v500, %v323
  %v594 = vmul.f32 %v505, %v326
  %v595 = vmul.f32 %v510, %v331
  %v596 = vmul.f32 %v515, %v334
  %v597 = vmul.f32 %v520, %v339
  %v598 = vmul.f32 %v525, %v342
  %v599 = vmul.f32 %v530, %v347
  %v600 = vmul.f32 %v535, %v350
  %v601 = vmul.f32 %v540, %v355
  %v602 = vmul.f32 %v545, %v358
  %v603 = vmul.f32 %v550, %v363
  %v604 = vmul.f32 %v555, %v366
  %v605 = vmul.f32 %v560, %v371
  %v606 = vmul.f32 %v565, %v374
  %v607 = vmul.f32 %v570, %v379
  %v608 = vmul.f32 %v575, %v382
  %v609 = vpack.c.bf16 %v578, %v577
  %v610 = vpack.c.bf16 %v580, %v579
  %v611 = vpack.c.bf16 %v582, %v581
  %v612 = vpack.c.bf16 %v584, %v583
  %v613 = vpack.c.bf16 %v586, %v585
  %v614 = vpack.c.bf16 %v588, %v587
  %v615 = vpack.c.bf16 %v590, %v589
  %v616 = vpack.c.bf16 %v592, %v591
  %v617 = vpack.c.bf16 %v594, %v593
  %v618 = vpack.c.bf16 %v596, %v595
  %v619 = vpack.c.bf16 %v598, %v597
  %v620 = vpack.c.bf16 %v600, %v599
  %v621 = vpack.c.bf16 %v602, %v601
  %v622 = vpack.c.bf16 %v604, %v603
  %v623 = vpack.c.bf16 %v606, %v605
  %v624 = vpack.c.bf16 %v608, %v607
  %v641 = vunpack.c.l.b16 %v609
  %v642 = vunpack.c.h.b16 %v609
  %v643 = vunpack.c.l.b16 %v610
  %v644 = vunpack.c.h.b16 %v610
  %v645 = vunpack.c.l.b16 %v611
  %v646 = vunpack.c.h.b16 %v611
  %v647 = vunpack.c.l.b16 %v612
  %v648 = vunpack.c.h.b16 %v612
  %v649 = vunpack.c.l.b16 %v613
  %v650 = vunpack.c.h.b16 %v613
  %v651 = vunpack.c.l.b16 %v614
  %v652 = vunpack.c.h.b16 %v614
  %v653 = vunpack.c.l.b16 %v615
  %v654 = vunpack.c.h.b16 %v615
  %v655 = vunpack.c.l.b16 %v616
  %v656 = vunpack.c.h.b16 %v616
  %v657 = vunpack.c.l.b16 %v617
  %v658 = vunpack.c.h.b16 %v617
  %v659 = vunpack.c.l.b16 %v618
  %v660 = vunpack.c.h.b16 %v618
  %v661 = vunpack.c.l.b16 %v619
  %v662 = vunpack.c.h.b16 %v619
  %v663 = vunpack.c.l.b16 %v620
  %v664 = vunpack.c.h.b16 %v620
  %v665 = vunpack.c.l.b16 %v621
  %v666 = vunpack.c.h.b16 %v621
  %v667 = vunpack.c.l.b16 %v622
  %v668 = vunpack.c.h.b16 %v622
  %v669 = vunpack.c.l.b16 %v623
  %v670 = vunpack.c.h.b16 %v623
  %v671 = vunpack.c.l.b16 %v624
  %v672 = vunpack.c.h.b16 %v624
  %v673 = vpack.c.b16 %v641, %v641
  %v674 = vpack.c.b16 %v642, %v642
  %v675 = vpack.c.b16 %v643, %v643
  %v676 = vpack.c.b16 %v644, %v644
  %v677 = vpack.c.b16 %v645, %v645
  %v678 = vpack.c.b16 %v646, %v646
  %v679 = vpack.c.b16 %v647, %v647
  %v680 = vpack.c.b16 %v648, %v648
  %v681 = vpack.c.b16 %v649, %v649
  %v682 = vpack.c.b16 %v650, %v650
  %v683 = vpack.c.b16 %v651, %v651
  %v684 = vpack.c.b16 %v652, %v652
  %v685 = vpack.c.b16 %v653, %v653
  %v686 = vpack.c.b16 %v654, %v654
  %v687 = vpack.c.b16 %v655, %v655
  %v688 = vpack.c.b16 %v656, %v656
  %v689 = vpack.c.b16 %v657, %v657
  %v690 = vpack.c.b16 %v658, %v658
  %v691 = vpack.c.b16 %v659, %v659
  %v692 = vpack.c.b16 %v660, %v660
  %v693 = vpack.c.b16 %v661, %v661
  %v694 = vpack.c.b16 %v662, %v662
  %v695 = vpack.c.b16 %v663, %v663
  %v696 = vpack.c.b16 %v664, %v664
  %v697 = vpack.c.b16 %v665, %v665
  %v698 = vpack.c.b16 %v666, %v666
  %v699 = vpack.c.b16 %v667, %v667
  %v700 = vpack.c.b16 %v668, %v668
  %v701 = vpack.c.b16 %v669, %v669
  %v702 = vpack.c.b16 %v670, %v670
  %v703 = vpack.c.b16 %v671, %v671
  %v704 = vpack.c.b16 %v672, %v672
  %737 = vst [vmem:[%s3] sm:$0xf] %v673
  %738 = vst [vmem:[%s3 + $0x4] sm:$0xf] %v674
  %739 = vst [vmem:[%s3 + $0x8] sm:$0xf] %v675
  %740 = vst [vmem:[%s3 + $0xc] sm:$0xf] %v676
  %741 = vst [vmem:[%s3 + $0x10] sm:$0xf] %v677
  %742 = vst [vmem:[%s3 + $0x14] sm:$0xf] %v678
  %743 = vst [vmem:[%s3 + $0x18] sm:$0xf] %v679
  %744 = vst [vmem:[%s3 + $0x1c] sm:$0xf] %v680
  %745 = vst [vmem:[%s3 + $0x20] sm:$0xf] %v681
  %746 = vst [vmem:[%s3 + $0x24] sm:$0xf] %v682
  %747 = vst [vmem:[%s3 + $0x28] sm:$0xf] %v683
  %748 = vst [vmem:[%s3 + $0x2c] sm:$0xf] %v684
  %749 = vst [vmem:[%s3 + $0x30] sm:$0xf] %v685
  %750 = vst [vmem:[%s3 + $0x34] sm:$0xf] %v686
  %751 = vst [vmem:[%s3 + $0x38] sm:$0xf] %v687
  %752 = vst [vmem:[%s3 + $0x3c] sm:$0xf] %v688
  %753 = vst [vmem:[%s3 + $0x40] sm:$0xf] %v689
  %754 = vst [vmem:[%s3 + $0x44] sm:$0xf] %v690
  %755 = vst [vmem:[%s3 + $0x48] sm:$0xf] %v691
  %756 = vst [vmem:[%s3 + $0x4c] sm:$0xf] %v692
  %757 = vst [vmem:[%s3 + $0x50] sm:$0xf] %v693
  %758 = vst [vmem:[%s3 + $0x54] sm:$0xf] %v694
  %759 = vst [vmem:[%s3 + $0x58] sm:$0xf] %v695
  %760 = vst [vmem:[%s3 + $0x5c] sm:$0xf] %v696
  %761 = vst [vmem:[%s3 + $0x60] sm:$0xf] %v697
  %762 = vst [vmem:[%s3 + $0x64] sm:$0xf] %v698
  %763 = vst [vmem:[%s3 + $0x68] sm:$0xf] %v699
  %764 = vst [vmem:[%s3 + $0x6c] sm:$0xf] %v700
  %765 = vst [vmem:[%s3 + $0x70] sm:$0xf] %v701
  %766 = vst [vmem:[%s3 + $0x74] sm:$0xf] %v702
  %767 = vst [vmem:[%s3 + $0x78] sm:$0xf] %v703
  %768 = vst [vmem:[%s3 + $0x7c] sm:$0xf] %v704
  // Predicated region
  $region14: #{lgcore_forward.3} parent=0 // pred_check
    _
  $region15: #{lgcore_forward.3} parent=0 // pred_check_branch
    %770 = sbr.rel (0) target = $region17
  $region16: #{lgcore_forward.3} parent=0 // pred_region
    _
  $region17: #{lgcore_forward.3} parent=0 // pred_fallthru
    _
  // Predicated region
  $region18: #{lgcore_forward.3} parent=0 // pred_check
    _
  $region19: #{lgcore_forward.3} parent=0 // pred_check_branch
    %772 = sbr.rel (0) target = $region21
  $region20: #{lgcore_forward.3} parent=0 // pred_region
    _
  $region21: #{lgcore_forward.3} parent=0 // pred_fallthru
    _

// kernel: lgcore_forward.4
$region0: #{lgcore_forward.4}
  #allocation0 [shape = 'u32[]', space=smem, size = 0x4, offset = 0x4, fixed_abs, tag = 'smem constant byte address 0x4 - core index']
  #allocation1 [shape = 'u32[144,128]{1,0:T(1,128)}', space=vmem, size = 0x12000, scoped, tag = 'internal scratch']
  #allocation2 [shape = 'f32[256,128]{1,0:T(8,128)}', space=vmem, size = 0x20000, scoped, tag = 'scratch operand']
  %s0 = inlined_call_operand.vmem [shape: bf16[256,256], index: 0, kind: input, shape index: {}]
  %s1 = inlined_call_operand.vmem [shape: bf16[256,128], index: 1, kind: input, shape index: {}, may-alias: {1,2}]
  %s2 = inlined_call_operand.vmem [shape: bf16[256,128], index: 2, kind: input, shape index: {}, may-alias: {1,2}]
  %s3 = inlined_call_operand.vmem [shape: f32[256,1], index: 3, kind: input, shape index: {}]
  %s4 = inlined_call_operand.vmem [shape: f32[1,128], index: 4, kind: input, shape index: {}]
  %s5 = inlined_call_operand.vmem [shape: f32[1,128], index: 5, kind: input, shape index: {}]
  %s6 = inlined_call_operand.vmem [shape: f32[1,128], index: 6, kind: input, shape index: {}]
  %s7 = inlined_call_operand.vmem [shape: bf16[256,128], index: 7, kind: output, shape index: {0}]
  %s8 = inlined_call_operand.vmem [shape: f32[8,128], index: 8, kind: output, shape index: {1}]
  %s9 = inlined_call_operand.vmem [shape: f32[8,128], index: 9, kind: output, shape index: {2}]
  %10 = xla_tuple %s7, %s8, %s9
  %s11 = sld [smem:[#allocation0]]
  $region62: #{lgcore_forward.4} parent=0
    _
  %s13 = ssub.s32 1, %s11
  %s14 = scalar_select 0, %s13, %s11
  // Predicated region
  $region2: #{lgcore_forward.4} parent=0 // pred_check
    _
  $region3: #{lgcore_forward.4} parent=0 // pred_check_branch
    %16 = sbr.rel (0) target = $region5
  $region4: #{lgcore_forward.4} parent=0 // pred_region
    _
  $region5: #{lgcore_forward.4} parent=0 // pred_fallthru
    _
  // Predicated region
  $region6: #{lgcore_forward.4} parent=0 // pred_check
    _
  $region7: #{lgcore_forward.4} parent=0 // pred_check_branch
    %18 = sbr.rel (0) target = $region9
  $region8: #{lgcore_forward.4} parent=0 // pred_region
    _
  $region9: #{lgcore_forward.4} parent=0 // pred_fallthru
    _
  // Predicated region
  $region10: #{lgcore_forward.4} parent=0 // pred_check
    _
  $region11: #{lgcore_forward.4} parent=0 // pred_check_branch
    %20 = sbr.rel (0) target = $region13
  $region12: #{lgcore_forward.4} parent=0 // pred_region
    _
  $region13: #{lgcore_forward.4} parent=0 // pred_fallthru
    _
  // Predicated region
  $region14: #{lgcore_forward.4} parent=0 // pred_check
    _
  $region15: #{lgcore_forward.4} parent=0 // pred_check_branch
    %22 = sbr.rel (0) target = $region17
  $region16: #{lgcore_forward.4} parent=0 // pred_region
    _
  $region17: #{lgcore_forward.4} parent=0 // pred_fallthru
    _
  // Predicated region
  $region18: #{lgcore_forward.4} parent=0 // pred_check
    _
  $region19: #{lgcore_forward.4} parent=0 // pred_check_branch
    %24 = sbr.rel (0) target = $region21
  $region20: #{lgcore_forward.4} parent=0 // pred_region
    _
  $region21: #{lgcore_forward.4} parent=0 // pred_fallthru
    _
  // Predicated region
  $region22: #{lgcore_forward.4} parent=0 // pred_check
    _
  $region23: #{lgcore_forward.4} parent=0 // pred_check_branch
    %26 = sbr.rel (0) target = $region25
  $region24: #{lgcore_forward.4} parent=0 // pred_region
    _
  $region25: #{lgcore_forward.4} parent=0 // pred_fallthru
    _
  // Predicated region
  $region26: #{lgcore_forward.4} parent=0 // pred_check
    _
  $region27: #{lgcore_forward.4} parent=0 // pred_check_branch
    %28 = sbr.rel (0) target = $region29
  $region28: #{lgcore_forward.4} parent=0 // pred_region
    _
  $region29: #{lgcore_forward.4} parent=0 // pred_fallthru
    _
  %p30 = scmp.eq.s32.totalorder 0, 0
  // Predicated region
  $region30: #{lgcore_forward.4} parent=0 // pred_check
    %p31 = pneg %p30
  $region31: #{lgcore_forward.4} parent=0 // pred_check_branch
    %33 = sbr.rel (%p31) target = $region33
  $region32: #{lgcore_forward.4} parent=0 // pred_region
    %34 = vst [vmem:[#allocation2] sm:$0xff] 0.0
    %35 = vst [vmem:[#allocation2 + $0x8] sm:$0xff] 0.0
    %36 = vst [vmem:[#allocation2 + $0x10] sm:$0xff] 0.0
    %37 = vst [vmem:[#allocation2 + $0x18] sm:$0xff] 0.0
    %38 = vst [vmem:[#allocation2 + $0x20] sm:$0xff] 0.0
    %39 = vst [vmem:[#allocation2 + $0x28] sm:$0xff] 0.0
    %40 = vst [vmem:[#allocation2 + $0x30] sm:$0xff] 0.0
    %41 = vst [vmem:[#allocation2 + $0x38] sm:$0xff] 0.0
    %42 = vst [vmem:[#allocation2 + $0x40] sm:$0xff] 0.0
    %43 = vst [vmem:[#allocation2 + $0x48] sm:$0xff] 0.0
    %44 = vst [vmem:[#allocation2 + $0x50] sm:$0xff] 0.0
    %45 = vst [vmem:[#allocation2 + $0x58] sm:$0xff] 0.0
    %46 = vst [vmem:[#allocation2 + $0x60] sm:$0xff] 0.0
    %47 = vst [vmem:[#allocation2 + $0x68] sm:$0xff] 0.0
    %48 = vst [vmem:[#allocation2 + $0x70] sm:$0xff] 0.0
    %49 = vst [vmem:[#allocation2 + $0x78] sm:$0xff] 0.0
    %50 = vst [vmem:[#allocation2 + $0x80] sm:$0xff] 0.0
    %51 = vst [vmem:[#allocation2 + $0x88] sm:$0xff] 0.0
    %52 = vst [vmem:[#allocation2 + $0x90] sm:$0xff] 0.0
    %53 = vst [vmem:[#allocation2 + $0x98] sm:$0xff] 0.0
    %54 = vst [vmem:[#allocation2 + $0xa0] sm:$0xff] 0.0
    %55 = vst [vmem:[#allocation2 + $0xa8] sm:$0xff] 0.0
    %56 = vst [vmem:[#allocation2 + $0xb0] sm:$0xff] 0.0
    %57 = vst [vmem:[#allocation2 + $0xb8] sm:$0xff] 0.0
    %58 = vst [vmem:[#allocation2 + $0xc0] sm:$0xff] 0.0
    %59 = vst [vmem:[#allocation2 + $0xc8] sm:$0xff] 0.0
    %60 = vst [vmem:[#allocation2 + $0xd0] sm:$0xff] 0.0
    %61 = vst [vmem:[#allocation2 + $0xd8] sm:$0xff] 0.0
    %62 = vst [vmem:[#allocation2 + $0xe0] sm:$0xff] 0.0
    %63 = vst [vmem:[#allocation2 + $0xe8] sm:$0xff] 0.0
    %64 = vst [vmem:[#allocation2 + $0xf0] sm:$0xff] 0.0
    %65 = vst [vmem:[#allocation2 + $0xf8] sm:$0xff] 0.0
  $region33: #{lgcore_forward.4} parent=0 // pred_fallthru
    _
  %s66 = smul.u32 0, 256
  %s67 = sshra.s32 %s66, 3
  %s68 = sand.u32 %s66, 7
  %s69 = smul.addr %s67, 4
  %s70 = scalar_lea.vmem %s1, %s69
  %v71 = vld [vmem:[%s70] sm:$0xf]
  %v72 = vld [vmem:[%s70 + $0x4] sm:$0xf]
  %v73 = vld [vmem:[%s70 + $0x8] sm:$0xf]
  %v74 = vld [vmem:[%s70 + $0xc] sm:$0xf]
  %v75 = vld [vmem:[%s70 + $0x10] sm:$0xf]
  %v76 = vld [vmem:[%s70 + $0x14] sm:$0xf]
  %v77 = vld [vmem:[%s70 + $0x18] sm:$0xf]
  %v78 = vld [vmem:[%s70 + $0x1c] sm:$0xf]
  %v79 = vld [vmem:[%s70 + $0x20] sm:$0xf]
  %v80 = vld [vmem:[%s70 + $0x24] sm:$0xf]
  %v81 = vld [vmem:[%s70 + $0x28] sm:$0xf]
  %v82 = vld [vmem:[%s70 + $0x2c] sm:$0xf]
  %v83 = vld [vmem:[%s70 + $0x30] sm:$0xf]
  %v84 = vld [vmem:[%s70 + $0x34] sm:$0xf]
  %v85 = vld [vmem:[%s70 + $0x38] sm:$0xf]
  %v86 = vld [vmem:[%s70 + $0x3c] sm:$0xf]
  %v87 = vld [vmem:[%s70 + $0x40] sm:$0xf]
  %v88 = vld [vmem:[%s70 + $0x44] sm:$0xf]
  %v89 = vld [vmem:[%s70 + $0x48] sm:$0xf]
  %v90 = vld [vmem:[%s70 + $0x4c] sm:$0xf]
  %v91 = vld [vmem:[%s70 + $0x50] sm:$0xf]
  %v92 = vld [vmem:[%s70 + $0x54] sm:$0xf]
  %v93 = vld [vmem:[%s70 + $0x58] sm:$0xf]
  %v94 = vld [vmem:[%s70 + $0x5c] sm:$0xf]
  %v95 = vld [vmem:[%s70 + $0x60] sm:$0xf]
  %v96 = vld [vmem:[%s70 + $0x64] sm:$0xf]
  %v97 = vld [vmem:[%s70 + $0x68] sm:$0xf]
  %v98 = vld [vmem:[%s70 + $0x6c] sm:$0xf]
  %v99 = vld [vmem:[%s70 + $0x70] sm:$0xf]
  %v100 = vld [vmem:[%s70 + $0x74] sm:$0xf]
  %v101 = vld [vmem:[%s70 + $0x78] sm:$0xf]
  %v102 = vld [vmem:[%s70 + $0x7c] sm:$0xf]
  %v103 = vld [vmem:[#allocation2] sm:$0xff]
  %v104 = vld [vmem:[#allocation2 + $0x8] sm:$0xff]
  %v105 = vld [vmem:[#allocation2 + $0x10] sm:$0xff]
  %v106 = vld [vmem:[#allocation2 + $0x18] sm:$0xff]
  %v107 = vld [vmem:[#allocation2 + $0x20] sm:$0xff]
  %v108 = vld [vmem:[#allocation2 + $0x28] sm:$0xff]
  %v109 = vld [vmem:[#allocation2 + $0x30] sm:$0xff]
  %v110 = vld [vmem:[#allocation2 + $0x38] sm:$0xff]
  %v111 = vld [vmem:[#allocation2 + $0x40] sm:$0xff]
  %v112 = vld [vmem:[#allocation2 + $0x48] sm:$0xff]
  %v113 = vld [vmem:[#allocation2 + $0x50] sm:$0xff]
  %v114 = vld [vmem:[#allocation2 + $0x58] sm:$0xff]
  %v115 = vld [vmem:[#allocation2 + $0x60] sm:$0xff]
  %v116 = vld [vmem:[#allocation2 + $0x68] sm:$0xff]
  %v117 = vld [vmem:[#allocation2 + $0x70] sm:$0xff]
  %v118 = vld [vmem:[#allocation2 + $0x78] sm:$0xff]
  %v119 = vld [vmem:[#allocation2 + $0x80] sm:$0xff]
  %v120 = vld [vmem:[#allocation2 + $0x88] sm:$0xff]
  %v121 = vld [vmem:[#allocation2 + $0x90] sm:$0xff]
  %v122 = vld [vmem:[#allocation2 + $0x98] sm:$0xff]
  %v123 = vld [vmem:[#allocation2 + $0xa0] sm:$0xff]
  %v124 = vld [vmem:[#allocation2 + $0xa8] sm:$0xff]
  %v125 = vld [vmem:[#allocation2 + $0xb0] sm:$0xff]
  %v126 = vld [vmem:[#allocation2 + $0xb8] sm:$0xff]
  %v127 = vld [vmem:[#allocation2 + $0xc0] sm:$0xff]
  %v128 = vld [vmem:[#allocation2 + $0xc8] sm:$0xff]
  %v129 = vld [vmem:[#allocation2 + $0xd0] sm:$0xff]
  %v130 = vld [vmem:[#allocation2 + $0xd8] sm:$0xff]
  %v131 = vld [vmem:[#allocation2 + $0xe0] sm:$0xff]
  %v132 = vld [vmem:[#allocation2 + $0xe8] sm:$0xff]
  %v133 = vld [vmem:[#allocation2 + $0xf0] sm:$0xff]
  %v134 = vld [vmem:[#allocation2 + $0xf8] sm:$0xff]
  %v135 = vld [vmem:[%s0] sm:$0xff]
  %v136 = vld [vmem:[%s0 + $0x8] sm:$0xff]
  %v137 = vld [vmem:[%s0 + $0x10] sm:$0xff]
  %v138 = vld [vmem:[%s0 + $0x18] sm:$0xff]
  %v139 = vld [vmem:[%s0 + $0x20] sm:$0xff]
  %v140 = vld [vmem:[%s0 + $0x28] sm:$0xff]
  %v141 = vld [vmem:[%s0 + $0x30] sm:$0xff]
  %v142 = vld [vmem:[%s0 + $0x38] sm:$0xff]
  %v143 = vld [vmem:[%s0 + $0x40] sm:$0xff]
  %v144 = vld [vmem:[%s0 + $0x48] sm:$0xff]
  %v145 = vld [vmem:[%s0 + $0x50] sm:$0xff]
  %v146 = vld [vmem:[%s0 + $0x58] sm:$0xff]
  %v147 = vld [vmem:[%s0 + $0x60] sm:$0xff]
  %v148 = vld [vmem:[%s0 + $0x68] sm:$0xff]
  %v149 = vld [vmem:[%s0 + $0x70] sm:$0xff]
  %v150 = vld [vmem:[%s0 + $0x78] sm:$0xff]
  %v151 = vld [vmem:[%s0 + $0x80] sm:$0xff]
  %v152 = vld [vmem:[%s0 + $0x88] sm:$0xff]
  %v153 = vld [vmem:[%s0 + $0x90] sm:$0xff]
  %v154 = vld [vmem:[%s0 + $0x98] sm:$0xff]
  %v155 = vld [vmem:[%s0 + $0xa0] sm:$0xff]
  %v156 = vld [vmem:[%s0 + $0xa8] sm:$0xff]
  %v157 = vld [vmem:[%s0 + $0xb0] sm:$0xff]
  %v158 = vld [vmem:[%s0 + $0xb8] sm:$0xff]
  %v159 = vld [vmem:[%s0 + $0xc0] sm:$0xff]
  %v160 = vld [vmem:[%s0 + $0xc8] sm:$0xff]
  %v161 = vld [vmem:[%s0 + $0xd0] sm:$0xff]
  %v162 = vld [vmem:[%s0 + $0xd8] sm:$0xff]
  %v163 = vld [vmem:[%s0 + $0xe0] sm:$0xff]
  %v164 = vld [vmem:[%s0 + $0xe8] sm:$0xff]
  %v165 = vld [vmem:[%s0 + $0xf0] sm:$0xff]
  %v166 = vld [vmem:[%s0 + $0xf8] sm:$0xff]
  %v199 = vunpack.c.l.b16 %v135
  %v200 = vunpack.c.h.b16 %v135
  %v201 = vunpack.c.l.b16 %v136
  %v202 = vunpack.c.h.b16 %v136
  %v203 = vunpack.c.l.b16 %v137
  %v204 = vunpack.c.h.b16 %v137
  %v205 = vunpack.c.l.b16 %v138
  %v206 = vunpack.c.h.b16 %v138
  %v207 = vunpack.c.l.b16 %v139
  %v208 = vunpack.c.h.b16 %v139
  %v209 = vunpack.c.l.b16 %v140
  %v210 = vunpack.c.h.b16 %v140
  %v211 = vunpack.c.l.b16 %v141
  %v212 = vunpack.c.h.b16 %v141
  %v213 = vunpack.c.l.b16 %v142
  %v214 = vunpack.c.h.b16 %v142
  %v215 = vunpack.c.l.b16 %v143
  %v216 = vunpack.c.h.b16 %v143
  %v217 = vunpack.c.l.b16 %v144
  %v218 = vunpack.c.h.b16 %v144
  %v219 = vunpack.c.l.b16 %v145
  %v220 = vunpack.c.h.b16 %v145
  %v221 = vunpack.c.l.b16 %v146
  %v222 = vunpack.c.h.b16 %v146
  %v223 = vunpack.c.l.b16 %v147
  %v224 = vunpack.c.h.b16 %v147
  %v225 = vunpack.c.l.b16 %v148
  %v226 = vunpack.c.h.b16 %v148
  %v227 = vunpack.c.l.b16 %v149
  %v228 = vunpack.c.h.b16 %v149
  %v229 = vunpack.c.l.b16 %v150
  %v230 = vunpack.c.h.b16 %v150
  %v231 = vunpack.c.l.b16 %v151
  %v232 = vunpack.c.h.b16 %v151
  %v233 = vunpack.c.l.b16 %v152
  %v234 = vunpack.c.h.b16 %v152
  %v235 = vunpack.c.l.b16 %v153
  %v236 = vunpack.c.h.b16 %v153
  %v237 = vunpack.c.l.b16 %v154
  %v238 = vunpack.c.h.b16 %v154
  %v239 = vunpack.c.l.b16 %v155
  %v240 = vunpack.c.h.b16 %v155
  %v241 = vunpack.c.l.b16 %v156
  %v242 = vunpack.c.h.b16 %v156
  %v243 = vunpack.c.l.b16 %v157
  %v244 = vunpack.c.h.b16 %v157
  %v245 = vunpack.c.l.b16 %v158
  %v246 = vunpack.c.h.b16 %v158
  %v247 = vunpack.c.l.b16 %v159
  %v248 = vunpack.c.h.b16 %v159
  %v249 = vunpack.c.l.b16 %v160
  %v250 = vunpack.c.h.b16 %v160
  %v251 = vunpack.c.l.b16 %v161
  %v252 = vunpack.c.h.b16 %v161
  %v253 = vunpack.c.l.b16 %v162
  %v254 = vunpack.c.h.b16 %v162
  %v255 = vunpack.c.l.b16 %v163
  %v256 = vunpack.c.h.b16 %v163
  %v257 = vunpack.c.l.b16 %v164
  %v258 = vunpack.c.h.b16 %v164
  %v259 = vunpack.c.l.b16 %v165
  %v260 = vunpack.c.h.b16 %v165
  %v261 = vunpack.c.l.b16 %v166
  %v262 = vunpack.c.h.b16 %v166
  %v263 = vpack.c.b16 %v201, %v199
  %v264 = vpack.c.b16 %v202, %v200
  %v265 = vpack.c.b16 %v205, %v203
  %v266 = vpack.c.b16 %v206, %v204
  %v267 = vpack.c.b16 %v209, %v207
  %v268 = vpack.c.b16 %v210, %v208
  %v269 = vpack.c.b16 %v213, %v211
  %v270 = vpack.c.b16 %v214, %v212
  %v271 = vpack.c.b16 %v217, %v215
  %v272 = vpack.c.b16 %v218, %v216
  %v273 = vpack.c.b16 %v221, %v219
  %v274 = vpack.c.b16 %v222, %v220
  %v275 = vpack.c.b16 %v225, %v223
  %v276 = vpack.c.b16 %v226, %v224
  %v277 = vpack.c.b16 %v229, %v227
  %v278 = vpack.c.b16 %v230, %v228
  %v279 = vpack.c.b16 %v233, %v231
  %v280 = vpack.c.b16 %v234, %v232
  %v281 = vpack.c.b16 %v237, %v235
  %v282 = vpack.c.b16 %v238, %v236
  %v283 = vpack.c.b16 %v241, %v239
  %v284 = vpack.c.b16 %v242, %v240
  %v285 = vpack.c.b16 %v245, %v243
  %v286 = vpack.c.b16 %v246, %v244
  %v287 = vpack.c.b16 %v249, %v247
  %v288 = vpack.c.b16 %v250, %v248
  %v289 = vpack.c.b16 %v253, %v251
  %v290 = vpack.c.b16 %v254, %v252
  %v291 = vpack.c.b16 %v257, %v255
  %v292 = vpack.c.b16 %v258, %v256
  %v293 = vpack.c.b16 %v261, %v259
  %v294 = vpack.c.b16 %v262, %v260
  %v359 = vunpack.c.l.b16 %v71
  %v360 = vunpack.c.l.b16 %v72
  %v361 = vunpack.c.l.b16 %v73
  %v362 = vunpack.c.l.b16 %v74
  %v363 = vunpack.c.l.b16 %v75
  %v364 = vunpack.c.l.b16 %v76
  %v365 = vunpack.c.l.b16 %v77
  %v366 = vunpack.c.l.b16 %v78
  %v367 = vunpack.c.l.b16 %v79
  %v368 = vunpack.c.l.b16 %v80
  %v369 = vunpack.c.l.b16 %v81
  %v370 = vunpack.c.l.b16 %v82
  %v371 = vunpack.c.l.b16 %v83
  %v372 = vunpack.c.l.b16 %v84
  %v373 = vunpack.c.l.b16 %v85
  %v374 = vunpack.c.l.b16 %v86
  %v375 = vunpack.c.l.b16 %v87
  %v376 = vunpack.c.l.b16 %v88
  %v377 = vunpack.c.l.b16 %v89
  %v378 = vunpack.c.l.b16 %v90
  %v379 = vunpack.c.l.b16 %v91
  %v380 = vunpack.c.l.b16 %v92
  %v381 = vunpack.c.l.b16 %v93
  %v382 = vunpack.c.l.b16 %v94
  %v383 = vunpack.c.l.b16 %v95
  %v384 = vunpack.c.l.b16 %v96
  %v385 = vunpack.c.l.b16 %v97
  %v386 = vunpack.c.l.b16 %v98
  %v387 = vunpack.c.l.b16 %v99
  %v388 = vunpack.c.l.b16 %v100
  %v389 = vunpack.c.l.b16 %v101
  %v390 = vunpack.c.l.b16 %v102
  %v391 = vpack.c.b16 %v360, %v359
  %v392 = vpack.c.b16 %v362, %v361
  %v393 = vpack.c.b16 %v364, %v363
  %v394 = vpack.c.b16 %v366, %v365
  %v395 = vpack.c.b16 %v368, %v367
  %v396 = vpack.c.b16 %v370, %v369
  %v397 = vpack.c.b16 %v372, %v371
  %v398 = vpack.c.b16 %v374, %v373
  %v399 = vpack.c.b16 %v376, %v375
  %v400 = vpack.c.b16 %v378, %v377
  %v401 = vpack.c.b16 %v380, %v379
  %v402 = vpack.c.b16 %v382, %v381
  %v403 = vpack.c.b16 %v384, %v383
  %v404 = vpack.c.b16 %v386, %v385
  %v405 = vpack.c.b16 %v388, %v387
  %v406 = vpack.c.b16 %v390, %v389
  %423 = vmatprep.subr.bf16.mxu0 0
  %424 = vmatpush1.bf16.msra.mxu0 %v391
  %425 = vmatprep.subr.bf16.mxu0 0
  %426 = vmatpush1.bf16.msra.mxu0 %v392
  %427 = vmatprep.subr.bf16.mxu0 0
  %428 = vmatpush1.bf16.msra.mxu0 %v393
  %429 = vmatprep.subr.bf16.mxu0 0
  %430 = vmatpush1.bf16.msra.mxu0 %v394
  %431 = vmatprep.subr.bf16.mxu0 0
  %432 = vmatpush1.bf16.msra.mxu0 %v395
  %433 = vmatprep.subr.bf16.mxu0 0
  %434 = vmatpush1.bf16.msra.mxu0 %v396
  %435 = vmatprep.subr.bf16.mxu0 0
  %436 = vmatpush1.bf16.msra.mxu0 %v397
  %437 = vmatprep.subr.bf16.mxu0 0
  %438 = vmatpush1.bf16.msra.mxu0 %v398
  %439 = vmatprep.subr.bf16.mxu0 0
  %440 = vmatpush1.bf16.msra.mxu0 %v399
  %441 = vmatprep.subr.bf16.mxu0 0
  %442 = vmatpush1.bf16.msra.mxu0 %v400
  %443 = vmatprep.subr.bf16.mxu0 0
  %444 = vmatpush1.bf16.msra.mxu0 %v401
  %445 = vmatprep.subr.bf16.mxu0 0
  %446 = vmatpush1.bf16.msra.mxu0 %v402
  %447 = vmatprep.subr.bf16.mxu0 0
  %448 = vmatpush1.bf16.msra.mxu0 %v403
  %449 = vmatprep.subr.bf16.mxu0 0
  %450 = vmatpush1.bf16.msra.mxu0 %v404
  %451 = vmatprep.subr.bf16.mxu0 0
  %452 = vmatpush1.bf16.msra.mxu0 %v405
  %453 = vmatprep.subr.bf16.mxu0 0
  %454 = vmatpush1.bf16.msra.mxu0 %v406
  %455 = vmatprep.mubr.bf16.mxu0 %v264
  %456 = vmatmul.mubr.bf16.gmra.mrb[0].mxu0 %v263
  %v457 = vpop.f32.mrb[0].mxu0
  %v458 = vadd.f32 0.0, %v457
  %v459 = vpop.f32.mrb[0].mxu0
  %v460 = vpop.f32.mrb[0].mxu0
  %v461 = vadd.f32 0.0, %v460
  %v462 = vpop.f32.mrb[0].mxu0
  %463 = vmatprep.mubr.bf16.mxu0 %v266
  %464 = vmatmul.mubr.bf16.gmra.mrb[0].mxu0 %v265
  %v465 = vpop.f32.mrb[0].mxu0
  %v466 = vadd.f32 0.0, %v465
  %v467 = vpop.f32.mrb[0].mxu0
  %v468 = vpop.f32.mrb[0].mxu0
  %v469 = vadd.f32 0.0, %v468
  %v470 = vpop.f32.mrb[0].mxu0
  %471 = vmatprep.mubr.bf16.mxu0 %v268
  %472 = vmatmul.mubr.bf16.gmra.mrb[0].mxu0 %v267
  %v473 = vpop.f32.mrb[0].mxu0
  %v474 = vadd.f32 0.0, %v473
  %v475 = vpop.f32.mrb[0].mxu0
  %v476 = vpop.f32.mrb[0].mxu0
  %v477 = vadd.f32 0.0, %v476
  %v478 = vpop.f32.mrb[0].mxu0
  %479 = vmatprep.mubr.bf16.mxu0 %v270
  %480 = vmatmul.mubr.bf16.gmra.mrb[0].mxu0 %v269
  %v481 = vpop.f32.mrb[0].mxu0
  %v482 = vadd.f32 0.0, %v481
  %v483 = vpop.f32.mrb[0].mxu0
  %v484 = vpop.f32.mrb[0].mxu0
  %v485 = vadd.f32 0.0, %v484
  %v486 = vpop.f32.mrb[0].mxu0
  %487 = vmatprep.mubr.bf16.mxu0 %v272
  %488 = vmatmul.mubr.bf16.gmra.mrb[0].mxu0 %v271
  %v489 = vpop.f32.mrb[0].mxu0
  %v490 = vadd.f32 0.0, %v489
  %v491 = vpop.f32.mrb[0].mxu0
  %v492 = vpop.f32.mrb[0].mxu0
  %v493 = vadd.f32 0.0, %v492
  %v494 = vpop.f32.mrb[0].mxu0
  %495 = vmatprep.mubr.bf16.mxu0 %v274
  %496 = vmatmul.mubr.bf16.gmra.mrb[0].mxu0 %v273
  %v497 = vpop.f32.mrb[0].mxu0
  %v498 = vadd.f32 0.0, %v497
  %v499 = vpop.f32.mrb[0].mxu0
  %v500 = vpop.f32.mrb[0].mxu0
  %v501 = vadd.f32 0.0, %v500
  %v502 = vpop.f32.mrb[0].mxu0
  %503 = vmatprep.mubr.bf16.mxu0 %v276
  %504 = vmatmul.mubr.bf16.gmra.mrb[0].mxu0 %v275
  %v505 = vpop.f32.mrb[0].mxu0
  %v506 = vadd.f32 0.0, %v505
  %v507 = vpop.f32.mrb[0].mxu0
  %v508 = vpop.f32.mrb[0].mxu0
  %v509 = vadd.f32 0.0, %v508
  %v510 = vpop.f32.mrb[0].mxu0
  %511 = vmatprep.mubr.bf16.mxu0 %v278
  %512 = vmatmul.mubr.bf16.gmra.mrb[0].mxu0 %v277
  %v513 = vpop.f32.mrb[0].mxu0
  %v514 = vadd.f32 0.0, %v513
  %v515 = vpop.f32.mrb[0].mxu0
  %v516 = vpop.f32.mrb[0].mxu0
  %v517 = vadd.f32 0.0, %v516
  %v518 = vpop.f32.mrb[0].mxu0
  %519 = vmatprep.mubr.bf16.mxu0 %v280
  %520 = vmatmul.mubr.bf16.gmra.mrb[0].mxu0 %v279
  %v521 = vpop.f32.mrb[0].mxu0
  %v522 = vadd.f32 0.0, %v521
  %v523 = vpop.f32.mrb[0].mxu0
  %v524 = vpop.f32.mrb[0].mxu0
  %v525 = vadd.f32 0.0, %v524
  %v526 = vpop.f32.mrb[0].mxu0
  %527 = vmatprep.mubr.bf16.mxu0 %v282
  %528 = vmatmul.mubr.bf16.gmra.mrb[0].mxu0 %v281
  %v529 = vpop.f32.mrb[0].mxu0
  %v530 = vadd.f32 0.0, %v529
  %v531 = vpop.f32.mrb[0].mxu0
  %v532 = vpop.f32.mrb[0].mxu0
  %v533 = vadd.f32 0.0, %v532
  %v534 = vpop.f32.mrb[0].mxu0
  %535 = vmatprep.mubr.bf16.mxu0 %v284
  %536 = vmatmul.mubr.bf16.gmra.mrb[0].mxu0 %v283
  %v537 = vpop.f32.mrb[0].mxu0
  %v538 = vadd.f32 0.0, %v537
  %v539 = vpop.f32.mrb[0].mxu0
  %v540 = vpop.f32.mrb[0].mxu0
  %v541 = vadd.f32 0.0, %v540
  %v542 = vpop.f32.mrb[0].mxu0
  %543 = vmatprep.mubr.bf16.mxu0 %v286
  %544 = vmatmul.mubr.bf16.gmra.mrb[0].mxu0 %v285
  %v545 = vpop.f32.mrb[0].mxu0
  %v546 = vadd.f32 0.0, %v545
  %v547 = vpop.f32.mrb[0].mxu0
  %v548 = vpop.f32.mrb[0].mxu0
  %v549 = vadd.f32 0.0, %v548
  %v550 = vpop.f32.mrb[0].mxu0
  %551 = vmatprep.mubr.bf16.mxu0 %v288
  %552 = vmatmul.mubr.bf16.gmra.mrb[0].mxu0 %v287
  %v553 = vpop.f32.mrb[0].mxu0
  %v554 = vadd.f32 0.0, %v553
  %v555 = vpop.f32.mrb[0].mxu0
  %v556 = vpop.f32.mrb[0].mxu0
  %v557 = vadd.f32 0.0, %v556
  %v558 = vpop.f32.mrb[0].mxu0
  %559 = vmatprep.mubr.bf16.mxu0 %v290
  %560 = vmatmul.mubr.bf16.gmra.mrb[0].mxu0 %v289
  %v561 = vpop.f32.mrb[0].mxu0
  %v562 = vadd.f32 0.0, %v561
  %v563 = vpop.f32.mrb[0].mxu0
  %v564 = vpop.f32.mrb[0].mxu0
  %v565 = vadd.f32 0.0, %v564
  %v566 = vpop.f32.mrb[0].mxu0
  %567 = vmatprep.mubr.bf16.mxu0 %v292
  %568 = vmatmul.mubr.bf16.gmra.mrb[0].mxu0 %v291
  %v569 = vpop.f32.mrb[0].mxu0
  %v570 = vadd.f32 0.0, %v569
  %v571 = vpop.f32.mrb[0].mxu0
  %v572 = vpop.f32.mrb[0].mxu0
  %v573 = vadd.f32 0.0, %v572
  %v574 = vpop.f32.mrb[0].mxu0
  %575 = vmatprep.mubr.bf16.mxu0 %v294
  %576 = vmatmul.mubr.bf16.gmra.mrb[0].mxu0 %v293
  %v577 = vpop.f32.mrb[0].mxu0
  %v578 = vadd.f32 0.0, %v577
  %v579 = vpop.f32.mrb[0].mxu0
  %v580 = vpop.f32.mrb[0].mxu0
  %v581 = vadd.f32 0.0, %v580
  %v582 = vpop.f32.mrb[0].mxu0
  %583 = vdwg.mxu0
  %v584 = vadd.f32 %v103, %v458
  %v585 = vadd.f32 %v104, %v461
  %v586 = vadd.f32 %v105, %v466
  %v587 = vadd.f32 %v106, %v469
  %v588 = vadd.f32 %v107, %v474
  %v589 = vadd.f32 %v108, %v477
  %v590 = vadd.f32 %v109, %v482
  %v591 = vadd.f32 %v110, %v485
  %v592 = vadd.f32 %v111, %v490
  %v593 = vadd.f32 %v112, %v493
  %v594 = vadd.f32 %v113, %v498
  %v595 = vadd.f32 %v114, %v501
  %v596 = vadd.f32 %v115, %v506
  %v597 = vadd.f32 %v116, %v509
  %v598 = vadd.f32 %v117, %v514
  %v599 = vadd.f32 %v118, %v517
  %v600 = vadd.f32 %v119, %v522
  %v601 = vadd.f32 %v120, %v525
  %v602 = vadd.f32 %v121, %v530
  %v603 = vadd.f32 %v122, %v533
  %v604 = vadd.f32 %v123, %v538
  %v605 = vadd.f32 %v124, %v541
  %v606 = vadd.f32 %v125, %v546
  %v607 = vadd.f32 %v126, %v549
  %v608 = vadd.f32 %v127, %v554
  %v609 = vadd.f32 %v128, %v557
  %v610 = vadd.f32 %v129, %v562
  %v611 = vadd.f32 %v130, %v565
  %v612 = vadd.f32 %v131, %v570
  %v613 = vadd.f32 %v132, %v573
  %v614 = vadd.f32 %v133, %v578
  %v615 = vadd.f32 %v134, %v581
  %616 = vst [vmem:[#allocation2] sm:$0xff] %v584
  %617 = vst [vmem:[#allocation2 + $0x8] sm:$0xff] %v585
  %618 = vst [vmem:[#allocation2 + $0x10] sm:$0xff] %v586
  %619 = vst [vmem:[#allocation2 + $0x18] sm:$0xff] %v587
  %620 = vst [vmem:[#allocation2 + $0x20] sm:$0xff] %v588
  %621 = vst [vmem:[#allocation2 + $0x28] sm:$0xff] %v589
  %622 = vst [vmem:[#allocation2 + $0x30] sm:$0xff] %v590
  %623 = vst [vmem:[#allocation2 + $0x38] sm:$0xff] %v591
  %624 = vst [vmem:[#allocation2 + $0x40] sm:$0xff] %v592
  %625 = vst [vmem:[#allocation2 + $0x48] sm:$0xff] %v593
  %626 = vst [vmem:[#allocation2 + $0x50] sm:$0xff] %v594
  %627 = vst [vmem:[#allocation2 + $0x58] sm:$0xff] %v595
  %628 = vst [vmem:[#allocation2 + $0x60] sm:$0xff] %v596
  %629 = vst [vmem:[#allocation2 + $0x68] sm:$0xff] %v597
  %630 = vst [vmem:[#allocation2 + $0x70] sm:$0xff] %v598
  %631 = vst [vmem:[#allocation2 + $0x78] sm:$0xff] %v599
  %632 = vst [vmem:[#allocation2 + $0x80] sm:$0xff] %v600
  %633 = vst [vmem:[#allocation2 + $0x88] sm:$0xff] %v601
  %634 = vst [vmem:[#allocation2 + $0x90] sm:$0xff] %v602
  %635 = vst [vmem:[#allocation2 + $0x98] sm:$0xff] %v603
  %636 = vst [vmem:[#allocation2 + $0xa0] sm:$0xff] %v604
  %637 = vst [vmem:[#allocation2 + $0xa8] sm:$0xff] %v605
  %638 = vst [vmem:[#allocation2 + $0xb0] sm:$0xff] %v606
  %639 = vst [vmem:[#allocation2 + $0xb8] sm:$0xff] %v607
  %640 = vst [vmem:[#allocation2 + $0xc0] sm:$0xff] %v608
  %641 = vst [vmem:[#allocation2 + $0xc8] sm:$0xff] %v609
  %642 = vst [vmem:[#allocation2 + $0xd0] sm:$0xff] %v610
  %643 = vst [vmem:[#allocation2 + $0xd8] sm:$0xff] %v611
  %644 = vst [vmem:[#allocation2 + $0xe0] sm:$0xff] %v612
  %645 = vst [vmem:[#allocation2 + $0xe8] sm:$0xff] %v613
  %646 = vst [vmem:[#allocation2 + $0xf0] sm:$0xff] %v614
  %647 = vst [vmem:[#allocation2 + $0xf8] sm:$0xff] %v615
  // Predicated region
  $region34: #{lgcore_forward.4} parent=0 // pred_check
    %p648 = pneg %p30
  $region35: #{lgcore_forward.4} parent=0 // pred_check_branch
    %650 = sbr.rel (%p648) target = $region37
  $region36: #{lgcore_forward.4} parent=0 // pred_region
    %v651 = vld [vmem:[%s3] sm:$0xff]
    %v652 = vld [vmem:[%s3 + $0x8] sm:$0xff]
    %v653 = vld [vmem:[%s3 + $0x10] sm:$0xff]
    %v654 = vld [vmem:[%s3 + $0x18] sm:$0xff]
    %v655 = vld [vmem:[%s3 + $0x20] sm:$0xff]
    %v656 = vld [vmem:[%s3 + $0x28] sm:$0xff]
    %v657 = vld [vmem:[%s3 + $0x30] sm:$0xff]
    %v658 = vld [vmem:[%s3 + $0x38] sm:$0xff]
    %v659 = vld [vmem:[%s3 + $0x40] sm:$0xff]
    %v660 = vld [vmem:[%s3 + $0x48] sm:$0xff]
    %v661 = vld [vmem:[%s3 + $0x50] sm:$0xff]
    %v662 = vld [vmem:[%s3 + $0x58] sm:$0xff]
    %v663 = vld [vmem:[%s3 + $0x60] sm:$0xff]
    %v664 = vld [vmem:[%s3 + $0x68] sm:$0xff]
    %v665 = vld [vmem:[%s3 + $0x70] sm:$0xff]
    %v666 = vld [vmem:[%s3 + $0x78] sm:$0xff]
    %v667 = vld [vmem:[%s3 + $0x80] sm:$0xff]
    %v668 = vld [vmem:[%s3 + $0x88] sm:$0xff]
    %v669 = vld [vmem:[%s3 + $0x90] sm:$0xff]
    %v670 = vld [vmem:[%s3 + $0x98] sm:$0xff]
    %v671 = vld [vmem:[%s3 + $0xa0] sm:$0xff]
    %v672 = vld [vmem:[%s3 + $0xa8] sm:$0xff]
    %v673 = vld [vmem:[%s3 + $0xb0] sm:$0xff]
    %v674 = vld [vmem:[%s3 + $0xb8] sm:$0xff]
    %v675 = vld [vmem:[%s3 + $0xc0] sm:$0xff]
    %v676 = vld [vmem:[%s3 + $0xc8] sm:$0xff]
    %v677 = vld [vmem:[%s3 + $0xd0] sm:$0xff]
    %v678 = vld [vmem:[%s3 + $0xd8] sm:$0xff]
    %v679 = vld [vmem:[%s3 + $0xe0] sm:$0xff]
    %v680 = vld [vmem:[%s3 + $0xe8] sm:$0xff]
    %v681 = vld [vmem:[%s3 + $0xf0] sm:$0xff]
    %v682 = vld [vmem:[%s3 + $0xf8] sm:$0xff]
    %v683 = vld [vmem:[#allocation2] sm:$0xff]
    %v684 = vld [vmem:[#allocation2 + $0x8] sm:$0xff]
    %v685 = vld [vmem:[#allocation2 + $0x10] sm:$0xff]
    %v686 = vld [vmem:[#allocation2 + $0x18] sm:$0xff]
    %v687 = vld [vmem:[#allocation2 + $0x20] sm:$0xff]
    %v688 = vld [vmem:[#allocation2 + $0x28] sm:$0xff]
    %v689 = vld [vmem:[#allocation2 + $0x30] sm:$0xff]
    %v690 = vld [vmem:[#allocation2 + $0x38] sm:$0xff]
    %v691 = vld [vmem:[#allocation2 + $0x40] sm:$0xff]
    %v692 = vld [vmem:[#allocation2 + $0x48] sm:$0xff]
    %v693 = vld [vmem:[#allocation2 + $0x50] sm:$0xff]
    %v694 = vld [vmem:[#allocation2 + $0x58] sm:$0xff]
    %v695 = vld [vmem:[#allocation2 + $0x60] sm:$0xff]
    %v696 = vld [vmem:[#allocation2 + $0x68] sm:$0xff]
    %v697 = vld [vmem:[#allocation2 + $0x70] sm:$0xff]
    %v698 = vld [vmem:[#allocation2 + $0x78] sm:$0xff]
    %v699 = vld [vmem:[#allocation2 + $0x80] sm:$0xff]
    %v700 = vld [vmem:[#allocation2 + $0x88] sm:$0xff]
    %v701 = vld [vmem:[#allocation2 + $0x90] sm:$0xff]
    %v702 = vld [vmem:[#allocation2 + $0x98] sm:$0xff]
    %v703 = vld [vmem:[#allocation2 + $0xa0] sm:$0xff]
    %v704 = vld [vmem:[#allocation2 + $0xa8] sm:$0xff]
    %v705 = vld [vmem:[#allocation2 + $0xb0] sm:$0xff]
    %v706 = vld [vmem:[#allocation2 + $0xb8] sm:$0xff]
    %v707 = vld [vmem:[#allocation2 + $0xc0] sm:$0xff]
    %v708 = vld [vmem:[#allocation2 + $0xc8] sm:$0xff]
    %v709 = vld [vmem:[#allocation2 + $0xd0] sm:$0xff]
    %v710 = vld [vmem:[#allocation2 + $0xd8] sm:$0xff]
    %v711 = vld [vmem:[#allocation2 + $0xe0] sm:$0xff]
    %v712 = vld [vmem:[#allocation2 + $0xe8] sm:$0xff]
    %v713 = vld [vmem:[#allocation2 + $0xf0] sm:$0xff]
    %v714 = vld [vmem:[#allocation2 + $0xf8] sm:$0xff]
    %v715 = vld [vmem:[%s2] sm:$0xf]
    %v716 = vld [vmem:[%s2 + $0x4] sm:$0xf]
    %v717 = vld [vmem:[%s2 + $0x8] sm:$0xf]
    %v718 = vld [vmem:[%s2 + $0xc] sm:$0xf]
    %v719 = vld [vmem:[%s2 + $0x10] sm:$0xf]
    %v720 = vld [vmem:[%s2 + $0x14] sm:$0xf]
    %v721 = vld [vmem:[%s2 + $0x18] sm:$0xf]
    %v722 = vld [vmem:[%s2 + $0x1c] sm:$0xf]
    %v723 = vld [vmem:[%s2 + $0x20] sm:$0xf]
    %v724 = vld [vmem:[%s2 + $0x24] sm:$0xf]
    %v725 = vld [vmem:[%s2 + $0x28] sm:$0xf]
    %v726 = vld [vmem:[%s2 + $0x2c] sm:$0xf]
    %v727 = vld [vmem:[%s2 + $0x30] sm:$0xf]
    %v728 = vld [vmem:[%s2 + $0x34] sm:$0xf]
    %v729 = vld [vmem:[%s2 + $0x38] sm:$0xf]
    %v730 = vld [vmem:[%s2 + $0x3c] sm:$0xf]
    %v731 = vld [vmem:[%s2 + $0x40] sm:$0xf]
    %v732 = vld [vmem:[%s2 + $0x44] sm:$0xf]
    %v733 = vld [vmem:[%s2 + $0x48] sm:$0xf]
    %v734 = vld [vmem:[%s2 + $0x4c] sm:$0xf]
    %v735 = vld [vmem:[%s2 + $0x50] sm:$0xf]
    %v736 = vld [vmem:[%s2 + $0x54] sm:$0xf]
    %v737 = vld [vmem:[%s2 + $0x58] sm:$0xf]
    %v738 = vld [vmem:[%s2 + $0x5c] sm:$0xf]
    %v739 = vld [vmem:[%s2 + $0x60] sm:$0xf]
    %v740 = vld [vmem:[%s2 + $0x64] sm:$0xf]
    %v741 = vld [vmem:[%s2 + $0x68] sm:$0xf]
    %v742 = vld [vmem:[%s2 + $0x6c] sm:$0xf]
    %v743 = vld [vmem:[%s2 + $0x70] sm:$0xf]
    %v744 = vld [vmem:[%s2 + $0x74] sm:$0xf]
    %v745 = vld [vmem:[%s2 + $0x78] sm:$0xf]
    %v746 = vld [vmem:[%s2 + $0x7c] sm:$0xf]
    %v747 = vunpack.c.l.bf16 %v715
    %v748 = vunpack.c.l.bf16 %v716
    %v749 = vunpack.c.l.bf16 %v717
    %v750 = vunpack.c.l.bf16 %v718
    %v751 = vunpack.c.l.bf16 %v719
    %v752 = vunpack.c.l.bf16 %v720
    %v753 = vunpack.c.l.bf16 %v721
    %v754 = vunpack.c.l.bf16 %v722
    %v755 = vunpack.c.l.bf16 %v723
    %v756 = vunpack.c.l.bf16 %v724
    %v757 = vunpack.c.l.bf16 %v725
    %v758 = vunpack.c.l.bf16 %v726
    %v759 = vunpack.c.l.bf16 %v727
    %v760 = vunpack.c.l.bf16 %v728
    %v761 = vunpack.c.l.bf16 %v729
    %v762 = vunpack.c.l.bf16 %v730
    %v763 = vunpack.c.l.bf16 %v731
    %v764 = vunpack.c.l.bf16 %v732
    %v765 = vunpack.c.l.bf16 %v733
    %v766 = vunpack.c.l.bf16 %v734
    %v767 = vunpack.c.l.bf16 %v735
    %v768 = vunpack.c.l.bf16 %v736
    %v769 = vunpack.c.l.bf16 %v737
    %v770 = vunpack.c.l.bf16 %v738
    %v771 = vunpack.c.l.bf16 %v739
    %v772 = vunpack.c.l.bf16 %v740
    %v773 = vunpack.c.l.bf16 %v741
    %v774 = vunpack.c.l.bf16 %v742
    %v775 = vunpack.c.l.bf16 %v743
    %v776 = vunpack.c.l.bf16 %v744
    %v777 = vunpack.c.l.bf16 %v745
    %v778 = vunpack.c.l.bf16 %v746
    %v779 = vadd.f32 %v683, %v747
    %v780 = vadd.f32 %v684, %v748
    %v781 = vadd.f32 %v685, %v749
    %v782 = vadd.f32 %v686, %v750
    %v783 = vadd.f32 %v687, %v751
    %v784 = vadd.f32 %v688, %v752
    %v785 = vadd.f32 %v689, %v753
    %v786 = vadd.f32 %v690, %v754
    %v787 = vadd.f32 %v691, %v755
    %v788 = vadd.f32 %v692, %v756
    %v789 = vadd.f32 %v693, %v757
    %v790 = vadd.f32 %v694, %v758
    %v791 = vadd.f32 %v695, %v759
    %v792 = vadd.f32 %v696, %v760
    %v793 = vadd.f32 %v697, %v761
    %v794 = vadd.f32 %v698, %v762
    %v795 = vadd.f32 %v699, %v763
    %v796 = vadd.f32 %v700, %v764
    %v797 = vadd.f32 %v701, %v765
    %v798 = vadd.f32 %v702, %v766
    %v799 = vadd.f32 %v703, %v767
    %v800 = vadd.f32 %v704, %v768
    %v801 = vadd.f32 %v705, %v769
    %v802 = vadd.f32 %v706, %v770
    %v803 = vadd.f32 %v707, %v771
    %v804 = vadd.f32 %v708, %v772
    %v805 = vadd.f32 %v709, %v773
    %v806 = vadd.f32 %v710, %v774
    %v807 = vadd.f32 %v711, %v775
    %v808 = vadd.f32 %v712, %v776
    %v809 = vadd.f32 %v713, %v777
    %v810 = vadd.f32 %v714, %v778
    %812 = vset.pattern.permute.xlu0 0
    %813 = vperm.xlu0 %812, %v651
    %v814 = vpop.permute.xlu0 %813
    %817 = vset.pattern.permute.xlu0 0
    %818 = vperm.xlu0 %817, %v652
    %v819 = vpop.permute.xlu0 %818
    %822 = vset.pattern.permute.xlu0 0
    %823 = vperm.xlu0 %822, %v653
    %v824 = vpop.permute.xlu0 %823
    %827 = vset.pattern.permute.xlu0 0
    %828 = vperm.xlu0 %827, %v654
    %v829 = vpop.permute.xlu0 %828
    %832 = vset.pattern.permute.xlu0 0
    %833 = vperm.xlu0 %832, %v655
    %v834 = vpop.permute.xlu0 %833
    %837 = vset.pattern.permute.xlu0 0
    %838 = vperm.xlu0 %837, %v656
    %v839 = vpop.permute.xlu0 %838
    %842 = vset.pattern.permute.xlu0 0
    %843 = vperm.xlu0 %842, %v657
    %v844 = vpop.permute.xlu0 %843
    %847 = vset.pattern.permute.xlu0 0
    %848 = vperm.xlu0 %847, %v658
    %v849 = vpop.permute.xlu0 %848
    %852 = vset.pattern.permute.xlu0 0
    %853 = vperm.xlu0 %852, %v659
    %v854 = vpop.permute.xlu0 %853
    %857 = vset.pattern.permute.xlu0 0
    %858 = vperm.xlu0 %857, %v660
    %v859 = vpop.permute.xlu0 %858
    %862 = vset.pattern.permute.xlu0 0
    %863 = vperm.xlu0 %862, %v661
    %v864 = vpop.permute.xlu0 %863
    %867 = vset.pattern.permute.xlu0 0
    %868 = vperm.xlu0 %867, %v662
    %v869 = vpop.permute.xlu0 %868
    %872 = vset.pattern.permute.xlu0 0
    %873 = vperm.xlu0 %872, %v663
    %v874 = vpop.permute.xlu0 %873
    %877 = vset.pattern.permute.xlu0 0
    %878 = vperm.xlu0 %877, %v664
    %v879 = vpop.permute.xlu0 %878
    %882 = vset.pattern.permute.xlu0 0
    %883 = vperm.xlu0 %882, %v665
    %v884 = vpop.permute.xlu0 %883
    %887 = vset.pattern.permute.xlu0 0
    %888 = vperm.xlu0 %887, %v666
    %v889 = vpop.permute.xlu0 %888
    %892 = vset.pattern.permute.xlu0 0
    %893 = vperm.xlu0 %892, %v667
    %v894 = vpop.permute.xlu0 %893
    %897 = vset.pattern.permute.xlu0 0
    %898 = vperm.xlu0 %897, %v668
    %v899 = vpop.permute.xlu0 %898
    %902 = vset.pattern.permute.xlu0 0
    %903 = vperm.xlu0 %902, %v669
    %v904 = vpop.permute.xlu0 %903
    %907 = vset.pattern.permute.xlu0 0
    %908 = vperm.xlu0 %907, %v670
    %v909 = vpop.permute.xlu0 %908
    %912 = vset.pattern.permute.xlu0 0
    %913 = vperm.xlu0 %912, %v671
    %v914 = vpop.permute.xlu0 %913
    %917 = vset.pattern.permute.xlu0 0
    %918 = vperm.xlu0 %917, %v672
    %v919 = vpop.permute.xlu0 %918
    %922 = vset.pattern.permute.xlu0 0
    %923 = vperm.xlu0 %922, %v673
    %v924 = vpop.permute.xlu0 %923
    %927 = vset.pattern.permute.xlu0 0
    %928 = vperm.xlu0 %927, %v674
    %v929 = vpop.permute.xlu0 %928
    %932 = vset.pattern.permute.xlu0 0
    %933 = vperm.xlu0 %932, %v675
    %v934 = vpop.permute.xlu0 %933
    %937 = vset.pattern.permute.xlu0 0
    %938 = vperm.xlu0 %937, %v676
    %v939 = vpop.permute.xlu0 %938
    %942 = vset.pattern.permute.xlu0 0
    %943 = vperm.xlu0 %942, %v677
    %v944 = vpop.permute.xlu0 %943
    %947 = vset.pattern.permute.xlu0 0
    %948 = vperm.xlu0 %947, %v678
    %v949 = vpop.permute.xlu0 %948
    %952 = vset.pattern.permute.xlu0 0
    %953 = vperm.xlu0 %952, %v679
    %v954 = vpop.permute.xlu0 %953
    %957 = vset.pattern.permute.xlu0 0
    %958 = vperm.xlu0 %957, %v680
    %v959 = vpop.permute.xlu0 %958
    %962 = vset.pattern.permute.xlu0 0
    %963 = vperm.xlu0 %962, %v681
    %v964 = vpop.permute.xlu0 %963
    %967 = vset.pattern.permute.xlu0 0
    %968 = vperm.xlu0 %967, %v682
    %v969 = vpop.permute.xlu0 %968
    %v971 = vmul.f32 %v814, %v779
    %v972 = vmul.f32 %v819, %v780
    %v973 = vmul.f32 %v824, %v781
    %v974 = vmul.f32 %v829, %v782
    %v975 = vmul.f32 %v834, %v783
    %v976 = vmul.f32 %v839, %v784
    %v977 = vmul.f32 %v844, %v785
    %v978 = vmul.f32 %v849, %v786
    %v979 = vmul.f32 %v854, %v787
    %v980 = vmul.f32 %v859, %v788
    %v981 = vmul.f32 %v864, %v789
    %v982 = vmul.f32 %v869, %v790
    %v983 = vmul.f32 %v874, %v791
    %v984 = vmul.f32 %v879, %v792
    %v985 = vmul.f32 %v884, %v793
    %v986 = vmul.f32 %v889, %v794
    %v987 = vmul.f32 %v894, %v795
    %v988 = vmul.f32 %v899, %v796
    %v989 = vmul.f32 %v904, %v797
    %v990 = vmul.f32 %v909, %v798
    %v991 = vmul.f32 %v914, %v799
    %v992 = vmul.f32 %v919, %v800
    %v993 = vmul.f32 %v924, %v801
    %v994 = vmul.f32 %v929, %v802
    %v995 = vmul.f32 %v934, %v803
    %v996 = vmul.f32 %v939, %v804
    %v997 = vmul.f32 %v944, %v805
    %v998 = vmul.f32 %v949, %v806
    %v999 = vmul.f32 %v954, %v807
    %v1000 = vmul.f32 %v959, %v808
    %v1001 = vmul.f32 %v964, %v809
    %v1002 = vmul.f32 %v969, %v810
    %v1003 = vld [vmem:[%s4] sm:$0x1]
    %v1005 = vlaneseq
    %v1006 = vshrl.u32 %v1005, 7
    %v1007 = vsub.s32 0, %v1006
    %v1008 = vrot.slane %v1003, %v1007
    %v1010 = vadd.f32 %v971, %v1008
    %v1011 = vadd.f32 %v972, %v1008
    %v1012 = vadd.f32 %v973, %v1008
    %v1013 = vadd.f32 %v974, %v1008
    %v1014 = vadd.f32 %v975, %v1008
    %v1015 = vadd.f32 %v976, %v1008
    %v1016 = vadd.f32 %v977, %v1008
    %v1017 = vadd.f32 %v978, %v1008
    %v1018 = vadd.f32 %v979, %v1008
    %v1019 = vadd.f32 %v980, %v1008
    %v1020 = vadd.f32 %v981, %v1008
    %v1021 = vadd.f32 %v982, %v1008
    %v1022 = vadd.f32 %v983, %v1008
    %v1023 = vadd.f32 %v984, %v1008
    %v1024 = vadd.f32 %v985, %v1008
    %v1025 = vadd.f32 %v986, %v1008
    %v1026 = vadd.f32 %v987, %v1008
    %v1027 = vadd.f32 %v988, %v1008
    %v1028 = vadd.f32 %v989, %v1008
    %v1029 = vadd.f32 %v990, %v1008
    %v1030 = vadd.f32 %v991, %v1008
    %v1031 = vadd.f32 %v992, %v1008
    %v1032 = vadd.f32 %v993, %v1008
    %v1033 = vadd.f32 %v994, %v1008
    %v1034 = vadd.f32 %v995, %v1008
    %v1035 = vadd.f32 %v996, %v1008
    %v1036 = vadd.f32 %v997, %v1008
    %v1037 = vadd.f32 %v998, %v1008
    %v1038 = vadd.f32 %v999, %v1008
    %v1039 = vadd.f32 %v1000, %v1008
    %v1040 = vadd.f32 %v1001, %v1008
    %v1041 = vadd.f32 %v1002, %v1008
    %1042 = vadd.xlane.f32.xlu0 %v1010
    %v1043 = vpop.xlane.xlu0 %1042
    %1044 = vadd.xlane.f32.xlu0 %v1011
    %v1045 = vpop.xlane.xlu0 %1044
    %1046 = vadd.xlane.f32.xlu0 %v1012
    %v1047 = vpop.xlane.xlu0 %1046
    %1048 = vadd.xlane.f32.xlu0 %v1013
    %v1049 = vpop.xlane.xlu0 %1048
    %1050 = vadd.xlane.f32.xlu0 %v1014
    %v1051 = vpop.xlane.xlu0 %1050
    %1052 = vadd.xlane.f32.xlu0 %v1015
    %v1053 = vpop.xlane.xlu0 %1052
    %1054 = vadd.xlane.f32.xlu0 %v1016
    %v1055 = vpop.xlane.xlu0 %1054
    %1056 = vadd.xlane.f32.xlu0 %v1017
    %v1057 = vpop.xlane.xlu0 %1056
    %1058 = vadd.xlane.f32.xlu0 %v1018
    %v1059 = vpop.xlane.xlu0 %1058
    %1060 = vadd.xlane.f32.xlu0 %v1019
    %v1061 = vpop.xlane.xlu0 %1060
    %1062 = vadd.xlane.f32.xlu0 %v1020
    %v1063 = vpop.xlane.xlu0 %1062
    %1064 = vadd.xlane.f32.xlu0 %v1021
    %v1065 = vpop.xlane.xlu0 %1064
    %1066 = vadd.xlane.f32.xlu0 %v1022
    %v1067 = vpop.xlane.xlu0 %1066
    %1068 = vadd.xlane.f32.xlu0 %v1023
    %v1069 = vpop.xlane.xlu0 %1068
    %1070 = vadd.xlane.f32.xlu0 %v1024
    %v1071 = vpop.xlane.xlu0 %1070
    %1072 = vadd.xlane.f32.xlu0 %v1025
    %v1073 = vpop.xlane.xlu0 %1072
    %1074 = vadd.xlane.f32.xlu0 %v1026
    %v1075 = vpop.xlane.xlu0 %1074
    %1076 = vadd.xlane.f32.xlu0 %v1027
    %v1077 = vpop.xlane.xlu0 %1076
    %1078 = vadd.xlane.f32.xlu0 %v1028
    %v1079 = vpop.xlane.xlu0 %1078
    %1080 = vadd.xlane.f32.xlu0 %v1029
    %v1081 = vpop.xlane.xlu0 %1080
    %1082 = vadd.xlane.f32.xlu0 %v1030
    %v1083 = vpop.xlane.xlu0 %1082
    %1084 = vadd.xlane.f32.xlu0 %v1031
    %v1085 = vpop.xlane.xlu0 %1084
    %1086 = vadd.xlane.f32.xlu0 %v1032
    %v1087 = vpop.xlane.xlu0 %1086
    %1088 = vadd.xlane.f32.xlu0 %v1033
    %v1089 = vpop.xlane.xlu0 %1088
    %1090 = vadd.xlane.f32.xlu0 %v1034
    %v1091 = vpop.xlane.xlu0 %1090
    %1092 = vadd.xlane.f32.xlu0 %v1035
    %v1093 = vpop.xlane.xlu0 %1092
    %1094 = vadd.xlane.f32.xlu0 %v1036
    %v1095 = vpop.xlane.xlu0 %1094
    %1096 = vadd.xlane.f32.xlu0 %v1037
    %v1097 = vpop.xlane.xlu0 %1096
    %1098 = vadd.xlane.f32.xlu0 %v1038
    %v1099 = vpop.xlane.xlu0 %1098
    %1100 = vadd.xlane.f32.xlu0 %v1039
    %v1101 = vpop.xlane.xlu0 %1100
    %1102 = vadd.xlane.f32.xlu0 %v1040
    %v1103 = vpop.xlane.xlu0 %1102
    %1104 = vadd.xlane.f32.xlu0 %v1041
    %v1105 = vpop.xlane.xlu0 %1104
    %v1106 = vrcp.pop 128.0
    %v1107 = vmul.f32 %v1043, %v1106
    %v1108 = vmul.f32 %v1045, %v1106
    %v1109 = vmul.f32 %v1047, %v1106
    %v1110 = vmul.f32 %v1049, %v1106
    %v1111 = vmul.f32 %v1051, %v1106
    %v1112 = vmul.f32 %v1053, %v1106
    %v1113 = vmul.f32 %v1055, %v1106
    %v1114 = vmul.f32 %v1057, %v1106
    %v1115 = vmul.f32 %v1059, %v1106
    %v1116 = vmul.f32 %v1061, %v1106
    %v1117 = vmul.f32 %v1063, %v1106
    %v1118 = vmul.f32 %v1065, %v1106
    %v1119 = vmul.f32 %v1067, %v1106
    %v1120 = vmul.f32 %v1069, %v1106
    %v1121 = vmul.f32 %v1071, %v1106
    %v1122 = vmul.f32 %v1073, %v1106
    %v1123 = vmul.f32 %v1075, %v1106
    %v1124 = vmul.f32 %v1077, %v1106
    %v1125 = vmul.f32 %v1079, %v1106
    %v1126 = vmul.f32 %v1081, %v1106
    %v1127 = vmul.f32 %v1083, %v1106
    %v1128 = vmul.f32 %v1085, %v1106
    %v1129 = vmul.f32 %v1087, %v1106
    %v1130 = vmul.f32 %v1089, %v1106
    %v1131 = vmul.f32 %v1091, %v1106
    %v1132 = vmul.f32 %v1093, %v1106
    %v1133 = vmul.f32 %v1095, %v1106
    %v1134 = vmul.f32 %v1097, %v1106
    %v1135 = vmul.f32 %v1099, %v1106
    %v1136 = vmul.f32 %v1101, %v1106
    %v1137 = vmul.f32 %v1103, %v1106
    %v1138 = vmul.f32 %v1105, %v1106
    %v1139 = vsub.f32 %v1010, %v1107
    %v1140 = vsub.f32 %v1011, %v1108
    %v1141 = vsub.f32 %v1012, %v1109
    %v1142 = vsub.f32 %v1013, %v1110
    %v1143 = vsub.f32 %v1014, %v1111
    %v1144 = vsub.f32 %v1015, %v1112
    %v1145 = vsub.f32 %v1016, %v1113
    %v1146 = vsub.f32 %v1017, %v1114
    %v1147 = vsub.f32 %v1018, %v1115
    %v1148 = vsub.f32 %v1019, %v1116
    %v1149 = vsub.f32 %v1020, %v1117
    %v1150 = vsub.f32 %v1021, %v1118
    %v1151 = vsub.f32 %v1022, %v1119
    %v1152 = vsub.f32 %v1023, %v1120
    %v1153 = vsub.f32 %v1024, %v1121
    %v1154 = vsub.f32 %v1025, %v1122
    %v1155 = vsub.f32 %v1026, %v1123
    %v1156 = vsub.f32 %v1027, %v1124
    %v1157 = vsub.f32 %v1028, %v1125
    %v1158 = vsub.f32 %v1029, %v1126
    %v1159 = vsub.f32 %v1030, %v1127
    %v1160 = vsub.f32 %v1031, %v1128
    %v1161 = vsub.f32 %v1032, %v1129
    %v1162 = vsub.f32 %v1033, %v1130
    %v1163 = vsub.f32 %v1034, %v1131
    %v1164 = vsub.f32 %v1035, %v1132
    %v1165 = vsub.f32 %v1036, %v1133
    %v1166 = vsub.f32 %v1037, %v1134
    %v1167 = vsub.f32 %v1038, %v1135
    %v1168 = vsub.f32 %v1039, %v1136
    %v1169 = vsub.f32 %v1040, %v1137
    %v1170 = vsub.f32 %v1041, %v1138
    %v1171 = vmul.f32 %v1139, %v1139
    %v1172 = vmul.f32 %v1140, %v1140
    %v1173 = vmul.f32 %v1141, %v1141
    %v1174 = vmul.f32 %v1142, %v1142
    %v1175 = vmul.f32 %v1143, %v1143
    %v1176 = vmul.f32 %v1144, %v1144
    %v1177 = vmul.f32 %v1145, %v1145
    %v1178 = vmul.f32 %v1146, %v1146
    %v1179 = vmul.f32 %v1147, %v1147
    %v1180 = vmul.f32 %v1148, %v1148
    %v1181 = vmul.f32 %v1149, %v1149
    %v1182 = vmul.f32 %v1150, %v1150
    %v1183 = vmul.f32 %v1151, %v1151
    %v1184 = vmul.f32 %v1152, %v1152
    %v1185 = vmul.f32 %v1153, %v1153
    %v1186 = vmul.f32 %v1154, %v1154
    %v1187 = vmul.f32 %v1155, %v1155
    %v1188 = vmul.f32 %v1156, %v1156
    %v1189 = vmul.f32 %v1157, %v1157
    %v1190 = vmul.f32 %v1158, %v1158
    %v1191 = vmul.f32 %v1159, %v1159
    %v1192 = vmul.f32 %v1160, %v1160
    %v1193 = vmul.f32 %v1161, %v1161
    %v1194 = vmul.f32 %v1162, %v1162
    %v1195 = vmul.f32 %v1163, %v1163
    %v1196 = vmul.f32 %v1164, %v1164
    %v1197 = vmul.f32 %v1165, %v1165
    %v1198 = vmul.f32 %v1166, %v1166
    %v1199 = vmul.f32 %v1167, %v1167
    %v1200 = vmul.f32 %v1168, %v1168
    %v1201 = vmul.f32 %v1169, %v1169
    %v1202 = vmul.f32 %v1170, %v1170
    %1203 = vadd.xlane.f32.xlu0 %v1171
    %v1204 = vpop.xlane.xlu0 %1203
    %1205 = vadd.xlane.f32.xlu0 %v1172
    %v1206 = vpop.xlane.xlu0 %1205
    %1207 = vadd.xlane.f32.xlu0 %v1173
    %v1208 = vpop.xlane.xlu0 %1207
    %1209 = vadd.xlane.f32.xlu0 %v1174
    %v1210 = vpop.xlane.xlu0 %1209
    %1211 = vadd.xlane.f32.xlu0 %v1175
    %v1212 = vpop.xlane.xlu0 %1211
    %1213 = vadd.xlane.f32.xlu0 %v1176
    %v1214 = vpop.xlane.xlu0 %1213
    %1215 = vadd.xlane.f32.xlu0 %v1177
    %v1216 = vpop.xlane.xlu0 %1215
    %1217 = vadd.xlane.f32.xlu0 %v1178
    %v1218 = vpop.xlane.xlu0 %1217
    %1219 = vadd.xlane.f32.xlu0 %v1179
    %v1220 = vpop.xlane.xlu0 %1219
    %1221 = vadd.xlane.f32.xlu0 %v1180
    %v1222 = vpop.xlane.xlu0 %1221
    %1223 = vadd.xlane.f32.xlu0 %v1181
    %v1224 = vpop.xlane.xlu0 %1223
    %1225 = vadd.xlane.f32.xlu0 %v1182
    %v1226 = vpop.xlane.xlu0 %1225
    %1227 = vadd.xlane.f32.xlu0 %v1183
    %v1228 = vpop.xlane.xlu0 %1227
    %1229 = vadd.xlane.f32.xlu0 %v1184
    %v1230 = vpop.xlane.xlu0 %1229
    %1231 = vadd.xlane.f32.xlu0 %v1185
    %v1232 = vpop.xlane.xlu0 %1231
    %1233 = vadd.xlane.f32.xlu0 %v1186
    %v1234 = vpop.xlane.xlu0 %1233
    %1235 = vadd.xlane.f32.xlu0 %v1187
    %v1236 = vpop.xlane.xlu0 %1235
    %1237 = vadd.xlane.f32.xlu0 %v1188
    %v1238 = vpop.xlane.xlu0 %1237
    %1239 = vadd.xlane.f32.xlu0 %v1189
    %v1240 = vpop.xlane.xlu0 %1239
    %1241 = vadd.xlane.f32.xlu0 %v1190
    %v1242 = vpop.xlane.xlu0 %1241
    %1243 = vadd.xlane.f32.xlu0 %v1191
    %v1244 = vpop.xlane.xlu0 %1243
    %1245 = vadd.xlane.f32.xlu0 %v1192
    %v1246 = vpop.xlane.xlu0 %1245
    %1247 = vadd.xlane.f32.xlu0 %v1193
    %v1248 = vpop.xlane.xlu0 %1247
    %1249 = vadd.xlane.f32.xlu0 %v1194
    %v1250 = vpop.xlane.xlu0 %1249
    %1251 = vadd.xlane.f32.xlu0 %v1195
    %v1252 = vpop.xlane.xlu0 %1251
    %1253 = vadd.xlane.f32.xlu0 %v1196
    %v1254 = vpop.xlane.xlu0 %1253
    %1255 = vadd.xlane.f32.xlu0 %v1197
    %v1256 = vpop.xlane.xlu0 %1255
    %1257 = vadd.xlane.f32.xlu0 %v1198
    %v1258 = vpop.xlane.xlu0 %1257
    %1259 = vadd.xlane.f32.xlu0 %v1199
    %v1260 = vpop.xlane.xlu0 %1259
    %1261 = vadd.xlane.f32.xlu0 %v1200
    %v1262 = vpop.xlane.xlu0 %1261
    %1263 = vadd.xlane.f32.xlu0 %v1201
    %v1264 = vpop.xlane.xlu0 %1263
    %1265 = vadd.xlane.f32.xlu0 %v1202
    %v1266 = vpop.xlane.xlu0 %1265
    %v1267 = vmul.f32 %v1204, %v1106
    %v1268 = vmul.f32 %v1206, %v1106
    %v1269 = vmul.f32 %v1208, %v1106
    %v1270 = vmul.f32 %v1210, %v1106
    %v1271 = vmul.f32 %v1212, %v1106
    %v1272 = vmul.f32 %v1214, %v1106
    %v1273 = vmul.f32 %v1216, %v1106
    %v1274 = vmul.f32 %v1218, %v1106
    %v1275 = vmul.f32 %v1220, %v1106
    %v1276 = vmul.f32 %v1222, %v1106
    %v1277 = vmul.f32 %v1224, %v1106
    %v1278 = vmul.f32 %v1226, %v1106
    %v1279 = vmul.f32 %v1228, %v1106
    %v1280 = vmul.f32 %v1230, %v1106
    %v1281 = vmul.f32 %v1232, %v1106
    %v1282 = vmul.f32 %v1234, %v1106
    %v1283 = vmul.f32 %v1236, %v1106
    %v1284 = vmul.f32 %v1238, %v1106
    %v1285 = vmul.f32 %v1240, %v1106
    %v1286 = vmul.f32 %v1242, %v1106
    %v1287 = vmul.f32 %v1244, %v1106
    %v1288 = vmul.f32 %v1246, %v1106
    %v1289 = vmul.f32 %v1248, %v1106
    %v1290 = vmul.f32 %v1250, %v1106
    %v1291 = vmul.f32 %v1252, %v1106
    %v1292 = vmul.f32 %v1254, %v1106
    %v1293 = vmul.f32 %v1256, %v1106
    %v1294 = vmul.f32 %v1258, %v1106
    %v1295 = vmul.f32 %v1260, %v1106
    %v1296 = vmul.f32 %v1262, %v1106
    %v1297 = vmul.f32 %v1264, %v1106
    %v1298 = vmul.f32 %v1266, %v1106
    %v1299 = vadd.f32 %v1267, 1e-05
    %v1300 = vadd.f32 %v1268, 1e-05
    %v1301 = vadd.f32 %v1269, 1e-05
    %v1302 = vadd.f32 %v1270, 1e-05
    %v1303 = vadd.f32 %v1271, 1e-05
    %v1304 = vadd.f32 %v1272, 1e-05
    %v1305 = vadd.f32 %v1273, 1e-05
    %v1306 = vadd.f32 %v1274, 1e-05
    %v1307 = vadd.f32 %v1275, 1e-05
    %v1308 = vadd.f32 %v1276, 1e-05
    %v1309 = vadd.f32 %v1277, 1e-05
    %v1310 = vadd.f32 %v1278, 1e-05
    %v1311 = vadd.f32 %v1279, 1e-05
    %v1312 = vadd.f32 %v1280, 1e-05
    %v1313 = vadd.f32 %v1281, 1e-05
    %v1314 = vadd.f32 %v1282, 1e-05
    %v1315 = vadd.f32 %v1283, 1e-05
    %v1316 = vadd.f32 %v1284, 1e-05
    %v1317 = vadd.f32 %v1285, 1e-05
    %v1318 = vadd.f32 %v1286, 1e-05
    %v1319 = vadd.f32 %v1287, 1e-05
    %v1320 = vadd.f32 %v1288, 1e-05
    %v1321 = vadd.f32 %v1289, 1e-05
    %v1322 = vadd.f32 %v1290, 1e-05
    %v1323 = vadd.f32 %v1291, 1e-05
    %v1324 = vadd.f32 %v1292, 1e-05
    %v1325 = vadd.f32 %v1293, 1e-05
    %v1326 = vadd.f32 %v1294, 1e-05
    %v1327 = vadd.f32 %v1295, 1e-05
    %v1328 = vadd.f32 %v1296, 1e-05
    %v1329 = vadd.f32 %v1297, 1e-05
    %v1330 = vadd.f32 %v1298, 1e-05
    %v1331 = vrsqrt.pop %v1299
    %v1332 = vrsqrt.pop %v1300
    %v1333 = vrsqrt.pop %v1301
    %v1334 = vrsqrt.pop %v1302
    %v1335 = vrsqrt.pop %v1303
    %v1336 = vrsqrt.pop %v1304
    %v1337 = vrsqrt.pop %v1305
    %v1338 = vrsqrt.pop %v1306
    %v1339 = vrsqrt.pop %v1307
    %v1340 = vrsqrt.pop %v1308
    %v1341 = vrsqrt.pop %v1309
    %v1342 = vrsqrt.pop %v1310
    %v1343 = vrsqrt.pop %v1311
    %v1344 = vrsqrt.pop %v1312
    %v1345 = vrsqrt.pop %v1313
    %v1346 = vrsqrt.pop %v1314
    %v1347 = vrsqrt.pop %v1315
    %v1348 = vrsqrt.pop %v1316
    %v1349 = vrsqrt.pop %v1317
    %v1350 = vrsqrt.pop %v1318
    %v1351 = vrsqrt.pop %v1319
    %v1352 = vrsqrt.pop %v1320
    %v1353 = vrsqrt.pop %v1321
    %v1354 = vrsqrt.pop %v1322
    %v1355 = vrsqrt.pop %v1323
    %v1356 = vrsqrt.pop %v1324
    %v1357 = vrsqrt.pop %v1325
    %v1358 = vrsqrt.pop %v1326
    %v1359 = vrsqrt.pop %v1327
    %v1360 = vrsqrt.pop %v1328
    %v1361 = vrsqrt.pop %v1329
    %v1362 = vrsqrt.pop %v1330
    %v1363 = vmul.f32 %v1139, %v1331
    %v1364 = vmul.f32 %v1140, %v1332
    %v1365 = vmul.f32 %v1141, %v1333
    %v1366 = vmul.f32 %v1142, %v1334
    %v1367 = vmul.f32 %v1143, %v1335
    %v1368 = vmul.f32 %v1144, %v1336
    %v1369 = vmul.f32 %v1145, %v1337
    %v1370 = vmul.f32 %v1146, %v1338
    %v1371 = vmul.f32 %v1147, %v1339
    %v1372 = vmul.f32 %v1148, %v1340
    %v1373 = vmul.f32 %v1149, %v1341
    %v1374 = vmul.f32 %v1150, %v1342
    %v1375 = vmul.f32 %v1151, %v1343
    %v1376 = vmul.f32 %v1152, %v1344
    %v1377 = vmul.f32 %v1153, %v1345
    %v1378 = vmul.f32 %v1154, %v1346
    %v1379 = vmul.f32 %v1155, %v1347
    %v1380 = vmul.f32 %v1156, %v1348
    %v1381 = vmul.f32 %v1157, %v1349
    %v1382 = vmul.f32 %v1158, %v1350
    %v1383 = vmul.f32 %v1159, %v1351
    %v1384 = vmul.f32 %v1160, %v1352
    %v1385 = vmul.f32 %v1161, %v1353
    %v1386 = vmul.f32 %v1162, %v1354
    %v1387 = vmul.f32 %v1163, %v1355
    %v1388 = vmul.f32 %v1164, %v1356
    %v1389 = vmul.f32 %v1165, %v1357
    %v1390 = vmul.f32 %v1166, %v1358
    %v1391 = vmul.f32 %v1167, %v1359
    %v1392 = vmul.f32 %v1168, %v1360
    %v1393 = vmul.f32 %v1169, %v1361
    %v1394 = vmul.f32 %v1170, %v1362
    %v1395 = vld [vmem:[%s5] sm:$0x1]
    %v1397 = vlaneseq
    %v1398 = vshrl.u32 %v1397, 7
    %v1399 = vsub.s32 0, %v1398
    %v1400 = vrot.slane %v1395, %v1399
    %v1402 = vmul.f32 %v1363, %v1400
    %v1403 = vmul.f32 %v1364, %v1400
    %v1404 = vmul.f32 %v1365, %v1400
    %v1405 = vmul.f32 %v1366, %v1400
    %v1406 = vmul.f32 %v1367, %v1400
    %v1407 = vmul.f32 %v1368, %v1400
    %v1408 = vmul.f32 %v1369, %v1400
    %v1409 = vmul.f32 %v1370, %v1400
    %v1410 = vmul.f32 %v1371, %v1400
    %v1411 = vmul.f32 %v1372, %v1400
    %v1412 = vmul.f32 %v1373, %v1400
    %v1413 = vmul.f32 %v1374, %v1400
    %v1414 = vmul.f32 %v1375, %v1400
    %v1415 = vmul.f32 %v1376, %v1400
    %v1416 = vmul.f32 %v1377, %v1400
    %v1417 = vmul.f32 %v1378, %v1400
    %v1418 = vmul.f32 %v1379, %v1400
    %v1419 = vmul.f32 %v1380, %v1400
    %v1420 = vmul.f32 %v1381, %v1400
    %v1421 = vmul.f32 %v1382, %v1400
    %v1422 = vmul.f32 %v1383, %v1400
    %v1423 = vmul.f32 %v1384, %v1400
    %v1424 = vmul.f32 %v1385, %v1400
    %v1425 = vmul.f32 %v1386, %v1400
    %v1426 = vmul.f32 %v1387, %v1400
    %v1427 = vmul.f32 %v1388, %v1400
    %v1428 = vmul.f32 %v1389, %v1400
    %v1429 = vmul.f32 %v1390, %v1400
    %v1430 = vmul.f32 %v1391, %v1400
    %v1431 = vmul.f32 %v1392, %v1400
    %v1432 = vmul.f32 %v1393, %v1400
    %v1433 = vmul.f32 %v1394, %v1400
    %v1434 = vld [vmem:[%s6] sm:$0x1]
    %v1436 = vlaneseq
    %v1437 = vshrl.u32 %v1436, 7
    %v1438 = vsub.s32 0, %v1437
    %v1439 = vrot.slane %v1434, %v1438
    %v1441 = vadd.f32 %v1402, %v1439
    %v1442 = vadd.f32 %v1403, %v1439
    %v1443 = vadd.f32 %v1404, %v1439
    %v1444 = vadd.f32 %v1405, %v1439
    %v1445 = vadd.f32 %v1406, %v1439
    %v1446 = vadd.f32 %v1407, %v1439
    %v1447 = vadd.f32 %v1408, %v1439
    %v1448 = vadd.f32 %v1409, %v1439
    %v1449 = vadd.f32 %v1410, %v1439
    %v1450 = vadd.f32 %v1411, %v1439
    %v1451 = vadd.f32 %v1412, %v1439
    %v1452 = vadd.f32 %v1413, %v1439
    %v1453 = vadd.f32 %v1414, %v1439
    %v1454 = vadd.f32 %v1415, %v1439
    %v1455 = vadd.f32 %v1416, %v1439
    %v1456 = vadd.f32 %v1417, %v1439
    %v1457 = vadd.f32 %v1418, %v1439
    %v1458 = vadd.f32 %v1419, %v1439
    %v1459 = vadd.f32 %v1420, %v1439
    %v1460 = vadd.f32 %v1421, %v1439
    %v1461 = vadd.f32 %v1422, %v1439
    %v1462 = vadd.f32 %v1423, %v1439
    %v1463 = vadd.f32 %v1424, %v1439
    %v1464 = vadd.f32 %v1425, %v1439
    %v1465 = vadd.f32 %v1426, %v1439
    %v1466 = vadd.f32 %v1427, %v1439
    %v1467 = vadd.f32 %v1428, %v1439
    %v1468 = vadd.f32 %v1429, %v1439
    %v1469 = vadd.f32 %v1430, %v1439
    %v1470 = vadd.f32 %v1431, %v1439
    %v1471 = vadd.f32 %v1432, %v1439
    %v1472 = vadd.f32 %v1433, %v1439
    %v1473 = vlaneseq
    %v1474 = vand.u32 %v1473, 127
    %vm1475 = vcmp.lt.s32.totalorder %v1474, 64
    %v1476 = vmax.f32 %v1441, 0.0
    %v1477 = vmax.f32 %v1442, 0.0
    %v1478 = vmax.f32 %v1443, 0.0
    %v1479 = vmax.f32 %v1444, 0.0
    %v1480 = vmax.f32 %v1445, 0.0
    %v1481 = vmax.f32 %v1446, 0.0
    %v1482 = vmax.f32 %v1447, 0.0
    %v1483 = vmax.f32 %v1448, 0.0
    %v1484 = vmax.f32 %v1449, 0.0
    %v1485 = vmax.f32 %v1450, 0.0
    %v1486 = vmax.f32 %v1451, 0.0
    %v1487 = vmax.f32 %v1452, 0.0
    %v1488 = vmax.f32 %v1453, 0.0
    %v1489 = vmax.f32 %v1454, 0.0
    %v1490 = vmax.f32 %v1455, 0.0
    %v1491 = vmax.f32 %v1456, 0.0
    %v1492 = vmax.f32 %v1457, 0.0
    %v1493 = vmax.f32 %v1458, 0.0
    %v1494 = vmax.f32 %v1459, 0.0
    %v1495 = vmax.f32 %v1460, 0.0
    %v1496 = vmax.f32 %v1461, 0.0
    %v1497 = vmax.f32 %v1462, 0.0
    %v1498 = vmax.f32 %v1463, 0.0
    %v1499 = vmax.f32 %v1464, 0.0
    %v1500 = vmax.f32 %v1465, 0.0
    %v1501 = vmax.f32 %v1466, 0.0
    %v1502 = vmax.f32 %v1467, 0.0
    %v1503 = vmax.f32 %v1468, 0.0
    %v1504 = vmax.f32 %v1469, 0.0
    %v1505 = vmax.f32 %v1470, 0.0
    %v1506 = vmax.f32 %v1471, 0.0
    %v1507 = vmax.f32 %v1472, 0.0
    %v1508 = vsel %vm1475, %v1441, %v1476
    %v1509 = vsel %vm1475, %v1442, %v1477
    %v1510 = vsel %vm1475, %v1443, %v1478
    %v1511 = vsel %vm1475, %v1444, %v1479
    %v1512 = vsel %vm1475, %v1445, %v1480
    %v1513 = vsel %vm1475, %v1446, %v1481
    %v1514 = vsel %vm1475, %v1447, %v1482
    %v1515 = vsel %vm1475, %v1448, %v1483
    %v1516 = vsel %vm1475, %v1449, %v1484
    %v1517 = vsel %vm1475, %v1450, %v1485
    %v1518 = vsel %vm1475, %v1451, %v1486
    %v1519 = vsel %vm1475, %v1452, %v1487
    %v1520 = vsel %vm1475, %v1453, %v1488
    %v1521 = vsel %vm1475, %v1454, %v1489
    %v1522 = vsel %vm1475, %v1455, %v1490
    %v1523 = vsel %vm1475, %v1456, %v1491
    %v1524 = vsel %vm1475, %v1457, %v1492
    %v1525 = vsel %vm1475, %v1458, %v1493
    %v1526 = vsel %vm1475, %v1459, %v1494
    %v1527 = vsel %vm1475, %v1460, %v1495
    %v1528 = vsel %vm1475, %v1461, %v1496
    %v1529 = vsel %vm1475, %v1462, %v1497
    %v1530 = vsel %vm1475, %v1463, %v1498
    %v1531 = vsel %vm1475, %v1464, %v1499
    %v1532 = vsel %vm1475, %v1465, %v1500
    %v1533 = vsel %vm1475, %v1466, %v1501
    %v1534 = vsel %vm1475, %v1467, %v1502
    %v1535 = vsel %vm1475, %v1468, %v1503
    %v1536 = vsel %vm1475, %v1469, %v1504
    %v1537 = vsel %vm1475, %v1470, %v1505
    %v1538 = vsel %vm1475, %v1471, %v1506
    %v1539 = vsel %vm1475, %v1472, %v1507
    %v1540 = vpack.c.bf16 %v1509, %v1508
    %v1541 = vpack.c.bf16 %v1511, %v1510
    %v1542 = vpack.c.bf16 %v1513, %v1512
    %v1543 = vpack.c.bf16 %v1515, %v1514
    %v1544 = vpack.c.bf16 %v1517, %v1516
    %v1545 = vpack.c.bf16 %v1519, %v1518
    %v1546 = vpack.c.bf16 %v1521, %v1520
    %v1547 = vpack.c.bf16 %v1523, %v1522
    %v1548 = vpack.c.bf16 %v1525, %v1524
    %v1549 = vpack.c.bf16 %v1527, %v1526
    %v1550 = vpack.c.bf16 %v1529, %v1528
    %v1551 = vpack.c.bf16 %v1531, %v1530
    %v1552 = vpack.c.bf16 %v1533, %v1532
    %v1553 = vpack.c.bf16 %v1535, %v1534
    %v1554 = vpack.c.bf16 %v1537, %v1536
    %v1555 = vpack.c.bf16 %v1539, %v1538
    %v1572 = vunpack.c.l.b16 %v1540
    %v1573 = vunpack.c.h.b16 %v1540
    %v1574 = vunpack.c.l.b16 %v1541
    %v1575 = vunpack.c.h.b16 %v1541
    %v1576 = vunpack.c.l.b16 %v1542
    %v1577 = vunpack.c.h.b16 %v1542
    %v1578 = vunpack.c.l.b16 %v1543
    %v1579 = vunpack.c.h.b16 %v1543
    %v1580 = vunpack.c.l.b16 %v1544
    %v1581 = vunpack.c.h.b16 %v1544
    %v1582 = vunpack.c.l.b16 %v1545
    %v1583 = vunpack.c.h.b16 %v1545
    %v1584 = vunpack.c.l.b16 %v1546
    %v1585 = vunpack.c.h.b16 %v1546
    %v1586 = vunpack.c.l.b16 %v1547
    %v1587 = vunpack.c.h.b16 %v1547
    %v1588 = vunpack.c.l.b16 %v1548
    %v1589 = vunpack.c.h.b16 %v1548
    %v1590 = vunpack.c.l.b16 %v1549
    %v1591 = vunpack.c.h.b16 %v1549
    %v1592 = vunpack.c.l.b16 %v1550
    %v1593 = vunpack.c.h.b16 %v1550
    %v1594 = vunpack.c.l.b16 %v1551
    %v1595 = vunpack.c.h.b16 %v1551
    %v1596 = vunpack.c.l.b16 %v1552
    %v1597 = vunpack.c.h.b16 %v1552
    %v1598 = vunpack.c.l.b16 %v1553
    %v1599 = vunpack.c.h.b16 %v1553
    %v1600 = vunpack.c.l.b16 %v1554
    %v1601 = vunpack.c.h.b16 %v1554
    %v1602 = vunpack.c.l.b16 %v1555
    %v1603 = vunpack.c.h.b16 %v1555
    %v1604 = vpack.c.b16 %v1572, %v1572
    %v1605 = vpack.c.b16 %v1573, %v1573
    %v1606 = vpack.c.b16 %v1574, %v1574
    %v1607 = vpack.c.b16 %v1575, %v1575
    %v1608 = vpack.c.b16 %v1576, %v1576
    %v1609 = vpack.c.b16 %v1577, %v1577
    %v1610 = vpack.c.b16 %v1578, %v1578
    %v1611 = vpack.c.b16 %v1579, %v1579
    %v1612 = vpack.c.b16 %v1580, %v1580
    %v1613 = vpack.c.b16 %v1581, %v1581
    %v1614 = vpack.c.b16 %v1582, %v1582
    %v1615 = vpack.c.b16 %v1583, %v1583
    %v1616 = vpack.c.b16 %v1584, %v1584
    %v1617 = vpack.c.b16 %v1585, %v1585
    %v1618 = vpack.c.b16 %v1586, %v1586
    %v1619 = vpack.c.b16 %v1587, %v1587
    %v1620 = vpack.c.b16 %v1588, %v1588
    %v1621 = vpack.c.b16 %v1589, %v1589
    %v1622 = vpack.c.b16 %v1590, %v1590
    %v1623 = vpack.c.b16 %v1591, %v1591
    %v1624 = vpack.c.b16 %v1592, %v1592
    %v1625 = vpack.c.b16 %v1593, %v1593
    %v1626 = vpack.c.b16 %v1594, %v1594
    %v1627 = vpack.c.b16 %v1595, %v1595
    %v1628 = vpack.c.b16 %v1596, %v1596
    %v1629 = vpack.c.b16 %v1597, %v1597
    %v1630 = vpack.c.b16 %v1598, %v1598
    %v1631 = vpack.c.b16 %v1599, %v1599
    %v1632 = vpack.c.b16 %v1600, %v1600
    %v1633 = vpack.c.b16 %v1601, %v1601
    %v1634 = vpack.c.b16 %v1602, %v1602
    %v1635 = vpack.c.b16 %v1603, %v1603
    %1668 = vst [vmem:[%s7] sm:$0xf] %v1604
    %1669 = vst [vmem:[%s7 + $0x4] sm:$0xf] %v1605
    %1670 = vst [vmem:[%s7 + $0x8] sm:$0xf] %v1606
    %1671 = vst [vmem:[%s7 + $0xc] sm:$0xf] %v1607
    %1672 = vst [vmem:[%s7 + $0x10] sm:$0xf] %v1608
    %1673 = vst [vmem:[%s7 + $0x14] sm:$0xf] %v1609
    %1674 = vst [vmem:[%s7 + $0x18] sm:$0xf] %v1610
    %1675 = vst [vmem:[%s7 + $0x1c] sm:$0xf] %v1611
    %1676 = vst [vmem:[%s7 + $0x20] sm:$0xf] %v1612
    %1677 = vst [vmem:[%s7 + $0x24] sm:$0xf] %v1613
    %1678 = vst [vmem:[%s7 + $0x28] sm:$0xf] %v1614
    %1679 = vst [vmem:[%s7 + $0x2c] sm:$0xf] %v1615
    %1680 = vst [vmem:[%s7 + $0x30] sm:$0xf] %v1616
    %1681 = vst [vmem:[%s7 + $0x34] sm:$0xf] %v1617
    %1682 = vst [vmem:[%s7 + $0x38] sm:$0xf] %v1618
    %1683 = vst [vmem:[%s7 + $0x3c] sm:$0xf] %v1619
    %1684 = vst [vmem:[%s7 + $0x40] sm:$0xf] %v1620
    %1685 = vst [vmem:[%s7 + $0x44] sm:$0xf] %v1621
    %1686 = vst [vmem:[%s7 + $0x48] sm:$0xf] %v1622
    %1687 = vst [vmem:[%s7 + $0x4c] sm:$0xf] %v1623
    %1688 = vst [vmem:[%s7 + $0x50] sm:$0xf] %v1624
    %1689 = vst [vmem:[%s7 + $0x54] sm:$0xf] %v1625
    %1690 = vst [vmem:[%s7 + $0x58] sm:$0xf] %v1626
    %1691 = vst [vmem:[%s7 + $0x5c] sm:$0xf] %v1627
    %1692 = vst [vmem:[%s7 + $0x60] sm:$0xf] %v1628
    %1693 = vst [vmem:[%s7 + $0x64] sm:$0xf] %v1629
    %1694 = vst [vmem:[%s7 + $0x68] sm:$0xf] %v1630
    %1695 = vst [vmem:[%s7 + $0x6c] sm:$0xf] %v1631
    %1696 = vst [vmem:[%s7 + $0x70] sm:$0xf] %v1632
    %1697 = vst [vmem:[%s7 + $0x74] sm:$0xf] %v1633
    %1698 = vst [vmem:[%s7 + $0x78] sm:$0xf] %v1634
    %1699 = vst [vmem:[%s7 + $0x7c] sm:$0xf] %v1635
    %v1700 = vadd.f32 %v1508, %v1509
    %v1701 = vadd.f32 %v1700, %v1510
    %v1702 = vadd.f32 %v1701, %v1511
    %v1703 = vadd.f32 %v1702, %v1512
    %v1704 = vadd.f32 %v1703, %v1513
    %v1705 = vadd.f32 %v1704, %v1514
    %v1706 = vadd.f32 %v1705, %v1515
    %v1707 = vadd.f32 %v1706, %v1516
    %v1708 = vadd.f32 %v1707, %v1517
    %v1709 = vadd.f32 %v1708, %v1518
    %v1710 = vadd.f32 %v1709, %v1519
    %v1711 = vadd.f32 %v1710, %v1520
    %v1712 = vadd.f32 %v1711, %v1521
    %v1713 = vadd.f32 %v1712, %v1522
    %v1714 = vadd.f32 %v1713, %v1523
    %v1715 = vadd.f32 %v1714, %v1524
    %v1716 = vadd.f32 %v1715, %v1525
    %v1717 = vadd.f32 %v1716, %v1526
    %v1718 = vadd.f32 %v1717, %v1527
    %v1719 = vadd.f32 %v1718, %v1528
    %v1720 = vadd.f32 %v1719, %v1529
    %v1721 = vadd.f32 %v1720, %v1530
    %v1722 = vadd.f32 %v1721, %v1531
    %v1723 = vadd.f32 %v1722, %v1532
    %v1724 = vadd.f32 %v1723, %v1533
    %v1725 = vadd.f32 %v1724, %v1534
    %v1726 = vadd.f32 %v1725, %v1535
    %v1727 = vadd.f32 %v1726, %v1536
    %v1728 = vadd.f32 %v1727, %v1537
    %v1729 = vadd.f32 %v1728, %v1538
    %v1730 = vadd.f32 %v1729, %v1539
    %v1731 = vrot.slane %v1730, 4
    %v1732 = vadd.f32 %v1730, %v1731
    %v1733 = vrot.slane %v1732, 2
    %v1734 = vadd.f32 %v1732, %v1733
    %v1735 = vrot.slane %v1734, 1
    %v1736 = vadd.f32 %v1734, %v1735
    %v1737 = vmul.f32 %v1508, %v1508
    %v1738 = vmul.f32 %v1509, %v1509
    %v1739 = vmul.f32 %v1510, %v1510
    %v1740 = vmul.f32 %v1511, %v1511
    %v1741 = vmul.f32 %v1512, %v1512
    %v1742 = vmul.f32 %v1513, %v1513
    %v1743 = vmul.f32 %v1514, %v1514
    %v1744 = vmul.f32 %v1515, %v1515
    %v1745 = vmul.f32 %v1516, %v1516
    %v1746 = vmul.f32 %v1517, %v1517
    %v1747 = vmul.f32 %v1518, %v1518
    %v1748 = vmul.f32 %v1519, %v1519
    %v1749 = vmul.f32 %v1520, %v1520
    %v1750 = vmul.f32 %v1521, %v1521
    %v1751 = vmul.f32 %v1522, %v1522
    %v1752 = vmul.f32 %v1523, %v1523
    %v1753 = vmul.f32 %v1524, %v1524
    %v1754 = vmul.f32 %v1525, %v1525
    %v1755 = vmul.f32 %v1526, %v1526
    %v1756 = vmul.f32 %v1527, %v1527
    %v1757 = vmul.f32 %v1528, %v1528
    %v1758 = vmul.f32 %v1529, %v1529
    %v1759 = vmul.f32 %v1530, %v1530
    %v1760 = vmul.f32 %v1531, %v1531
    %v1761 = vmul.f32 %v1532, %v1532
    %v1762 = vmul.f32 %v1533, %v1533
    %v1763 = vmul.f32 %v1534, %v1534
    %v1764 = vmul.f32 %v1535, %v1535
    %v1765 = vmul.f32 %v1536, %v1536
    %v1766 = vmul.f32 %v1537, %v1537
    %v1767 = vmul.f32 %v1538, %v1538
    %v1768 = vmul.f32 %v1539, %v1539
    %v1769 = vadd.f32 %v1737, %v1738
    %v1770 = vadd.f32 %v1769, %v1739
    %v1771 = vadd.f32 %v1770, %v1740
    %v1772 = vadd.f32 %v1771, %v1741
    %v1773 = vadd.f32 %v1772, %v1742
    %v1774 = vadd.f32 %v1773, %v1743
    %v1775 = vadd.f32 %v1774, %v1744
    %v1776 = vadd.f32 %v1775, %v1745
    %v1777 = vadd.f32 %v1776, %v1746
    %v1778 = vadd.f32 %v1777, %v1747
    %v1779 = vadd.f32 %v1778, %v1748
    %v1780 = vadd.f32 %v1779, %v1749
    %v1781 = vadd.f32 %v1780, %v1750
    %v1782 = vadd.f32 %v1781, %v1751
    %v1783 = vadd.f32 %v1782, %v1752
    %v1784 = vadd.f32 %v1783, %v1753
    %v1785 = vadd.f32 %v1784, %v1754
    %v1786 = vadd.f32 %v1785, %v1755
    %v1787 = vadd.f32 %v1786, %v1756
    %v1788 = vadd.f32 %v1787, %v1757
    %v1789 = vadd.f32 %v1788, %v1758
    %v1790 = vadd.f32 %v1789, %v1759
    %v1791 = vadd.f32 %v1790, %v1760
    %v1792 = vadd.f32 %v1791, %v1761
    %v1793 = vadd.f32 %v1792, %v1762
    %v1794 = vadd.f32 %v1793, %v1763
    %v1795 = vadd.f32 %v1794, %v1764
    %v1796 = vadd.f32 %v1795, %v1765
    %v1797 = vadd.f32 %v1796, %v1766
    %v1798 = vadd.f32 %v1797, %v1767
    %v1799 = vadd.f32 %v1798, %v1768
    %v1800 = vrot.slane %v1799, 4
    %v1801 = vadd.f32 %v1799, %v1800
    %v1802 = vrot.slane %v1801, 2
    %v1803 = vadd.f32 %v1801, %v1802
    %v1804 = vrot.slane %v1803, 1
    %v1805 = vadd.f32 %v1803, %v1804
    %1806 = vst [vmem:[%s8] sm:$0xff] %v1736
    %1807 = vst [vmem:[%s9] sm:$0xff] %v1805
  $region37: #{lgcore_forward.4} parent=0 // pred_fallthru
    _
  // Predicated region
  $region38: #{lgcore_forward.4} parent=0 // pred_check
    _
  $region39: #{lgcore_forward.4} parent=0 // pred_check_branch
    %1809 = sbr.rel (0) target = $region41
  $region40: #{lgcore_forward.4} parent=0 // pred_region
    _
  $region41: #{lgcore_forward.4} parent=0 // pred_fallthru
    _
  // Predicated region
  $region42: #{lgcore_forward.4} parent=0 // pred_check
    _
  $region43: #{lgcore_forward.4} parent=0 // pred_check_branch
    %1811 = sbr.rel (0) target = $region45
  $region44: #{lgcore_forward.4} parent=0 // pred_region
    _
  $region45: #{lgcore_forward.4} parent=0 // pred_fallthru
    _
  // Predicated region
  $region46: #{lgcore_forward.4} parent=0 // pred_check
    _
  $region47: #{lgcore_forward.4} parent=0 // pred_check_branch
    %1813 = sbr.rel (0) target = $region49
  $region48: #{lgcore_forward.4} parent=0 // pred_region
    _
  $region49: #{lgcore_forward.4} parent=0 // pred_fallthru
    _
  // Predicated region
  $region50: #{lgcore_forward.4} parent=0 // pred_check
    _
  $region51: #{lgcore_forward.4} parent=0 // pred_check_branch
    %1815 = sbr.rel (0) target = $region53
  $region52: #{lgcore_forward.4} parent=0 // pred_region
    _
  $region53: #{lgcore_forward.4} parent=0 // pred_fallthru
    _
  // Predicated region
  $region54: #{lgcore_forward.4} parent=0 // pred_check
    _
  $region55: #{lgcore_forward.4} parent=0 // pred_check_branch
    %1817 = sbr.rel (0) target = $region57
  $region56: #{lgcore_forward.4} parent=0 // pred_region
    _
  $region57: #{lgcore_forward.4} parent=0 // pred_fallthru
    _
  // Predicated region
  $region58: #{lgcore_forward.4} parent=0 // pred_check
    _
  $region59: #{lgcore_forward.4} parent=0 // pred_check_branch
    %1819 = sbr.rel (0) target = $region61
  $region60: #{lgcore_forward.4} parent=0 // pred_region
    _
  $region61: #{lgcore_forward.4} parent=0 // pred_fallthru
    _

</llo_original>
